<compile_context>
chip_gen: v7x
topology: tpu7x:2x2x1
jax: 0.10.0
libtpu: 0.0.40
codegen_flags: <defaults>
</compile_context>

<pallas_src>
import functools
import math

import jax
import jax.numpy as jnp
from jax.experimental import pallas as pl
from jax.experimental.pallas import tpu as pltpu


# TODO(synk): on v7x, consider pltpu.CORE_PARALLEL / pl.core_map for an explicit
# 2-TensorCore split of the row grid; plain "parallel" is kept here for safety.
_PARALLEL = pltpu.CompilerParams(dimension_semantics=("parallel",))

# Per-grid-step working-set budget (bytes).  Conservative so the double-buffered
# pipeline fits v5e's 16 MiB scoped-VMEM default and v7x's 64 MiB/TC VMEM.
_STEP_VMEM_BUDGET = 6 << 20


def _round_up(x, m):
    return ((x + m - 1) // m) * m


def _pick_rows(total, per_row_bytes, *, multiple=1, budget=_STEP_VMEM_BUDGET, cap=1024):
    """Largest R with R | total, R % multiple == 0 and ~2*R*per_row_bytes <= budget.
    Falls back to R = total (full-array blocks, always legal)."""
    limit = min(cap, max(multiple, budget // max(1, 2 * per_row_bytes)))
    best = None
    r = multiple
    while r <= min(total, limit):
        if total % r == 0:
            best = r
        r += multiple
    return total if best is None else best


# ----------------------------- Pallas kernels ------------------------------

def _matmul_bias_kernel(x_ref, w_ref, b_ref, o_ref):
    """Y = X @ W + b   (bf16 operands, f32 accumulate, cast on store)."""
    o_ref[...] = (jnp.dot(x_ref[...], w_ref[...],
                          preferred_element_type=jnp.float32)
                  + b_ref[...]).astype(o_ref.dtype)


def _patch_conv_kernel(x_ref, w_ref, b_ref, o_ref, *, k):
    """Patch-merging conv (kernel == stride == k), R output rows per step.
    x_ref: (R, k, nw, k*Cin) bf16  -- free row-major reshape of the NHWC input.
    w_ref: (k, k*Cin, Cout) bf16, b_ref: (1, Cout) f32, o_ref: (R, nw, Cout) bf16.
    The kw tap is folded into the contraction: k matmuls with K = k*Cin."""
    R, _, nw, kc = x_ref.shape
    cout = o_ref.shape[-1]
    acc = jnp.zeros((R * nw, cout), jnp.float32)
    for ki in range(k):
        xi = x_ref[:, ki, :, :].reshape(R * nw, kc)          # leading-dim merge only
        acc = acc + jnp.dot(xi, w_ref[ki], preferred_element_type=jnp.float32)
    o_ref[...] = (acc + b_ref[...]).reshape(R, nw, cout).astype(o_ref.dtype)


def _neck_fused_kernel(x_ref, wn_ref, bn_ref, prev_ref, ws_ref, bs_ref, *out_refs,
                       width, emit_lat):
    """One fused FPN level, R fine rows (= R*width pixels) per grid step:
       lat  = x @ Wneck + b + upsample2x(prev)        (f32 accumulate)
       proj = lat @ Wconv_s + b_s                      (SAM high-res projection)
    x_ref: (R*W, Cin) bf16, prev_ref: (R*W/2, D) bf16 (already column-doubled),
    outputs: optional lat (R*W, D) bf16 and proj (R*W, Ds) bf16.
    The H-axis 2x upsample is a leading-dim broadcast of prev (two consecutive
    fine rows share one coarse row) -- no sublane-interleave reshapes."""
    D = wn_ref.shape[1]
    n_fine = x_ref.shape[0]                  # R * W
    rh = n_fine // (2 * width)               # coarse rows in this block (R // 2)

    y = (jnp.dot(x_ref[...], wn_ref[...], preferred_element_type=jnp.float32)
         + bn_ref[...])                                              # (R*W, D)
    p = prev_ref[...].astype(jnp.float32).reshape(rh, 1, width, D)
    p = jnp.broadcast_to(p, (rh, 2, width, D)).reshape(n_fine, D)    # row-doubled
    y = y + p

    if emit_lat:
        lat_ref, proj_ref = out_refs
        lat_ref[...] = y.astype(lat_ref.dtype)
    else:
        (proj_ref,) = out_refs
    proj_ref[...] = (jnp.dot(y.astype(jnp.bfloat16), ws_ref[...],
                             preferred_element_type=jnp.float32)
                     + bs_ref[...]).astype(proj_ref.dtype)


# ----------------------------- kernel wrappers ------------------------------

def matmul_bias(x, w, b, out_dtype=jnp.bfloat16):
    """x: (M, K) bf16 @ w: (K, N) bf16 + b: (1, N) f32 -> (M, N) out_dtype.
    Tiled over M (128-aligned when M is large), cdiv grid (no whole-array
    fallback), pipelined and VMEM-budgeted."""
    M, K = x.shape
    K2, N = w.shape
    assert K == K2
    out_bytes = jnp.dtype(out_dtype).itemsize
    row_bytes = K * x.dtype.itemsize + N * out_bytes
    fixed = K * N * w.dtype.itemsize + N * 4
    avail = max(_STEP_VMEM_BUDGET - 2 * fixed, 1 << 20)
    align = 128 if M >= 128 else 8
    tm = max(align, min(2048, avail // max(1, 2 * row_bytes)))
    tm = max(align, (tm // align) * align)
    tm = min(tm, _round_up(M, align))
    grid_m = pl.cdiv(M, tm)
    return pl.pallas_call(
        _matmul_bias_kernel,
        grid=(grid_m,),
        in_specs=[
            pl.BlockSpec((tm, K), lambda i: (i, 0)),
            pl.BlockSpec((K, N), lambda i: (0, 0)),
            pl.BlockSpec((1, N), lambda i: (0, 0)),
        ],
        out_specs=pl.BlockSpec((tm, N), lambda i: (i, 0)),
        out_shape=jax.ShapeDtypeStruct((M, N), out_dtype),
        compiler_params=_PARALLEL,
        cost_estimate=pl.CostEstimate(
            flops=2 * M * K * N, transcendentals=0,
            bytes_accessed=M * K * 2 + K * N * 2 + N * 4 + M * N * out_bytes),
    )(x, w, b)


def patch_embed_im2col(x, w, b, k):
    """Stage-0 patch embed (kernel=stride=k, Cin=3) as a one-time XLA im2col +
    one tiled Pallas matmul; a Pallas NHWC path would fill only 3/128 lanes."""
    B, H, W, Cin = x.shape
    nh, nw = H // k, W // k
    Cout = w.shape[1]
    cols = x.reshape(B, nh, k, nw, k, Cin).transpose(0, 1, 3, 2, 4, 5)
    cols = cols.reshape(B * nh * nw, k * k * Cin)
    out = matmul_bias(cols, w, b, out_dtype=jnp.bfloat16)
    return out.reshape(B, nh, nw, Cout)


def patch_conv_nhwc(x, w, b, k):
    """Conv2d with kernel=stride=k on NHWC input (no padding), R rows per step.
    x: (B, H, W, Cin) bf16, w: (k, k*Cin, Cout) bf16, b: (1, Cout) f32
    -> (B, H/k, W/k, Cout) bf16."""
    B, H, W, Cin = x.shape
    assert H % k == 0 and W % k == 0
    nh, nw = H // k, W // k
    kc, Cout = w.shape[1], w.shape[2]
    assert kc == k * Cin
    x5 = x.reshape(B * nh, k, nw, kc)          # free row-major reshape
    rows = B * nh
    row_bytes = k * nw * kc * 2 + nw * Cout * 2
    R = _pick_rows(rows, row_bytes)
    out = pl.pallas_call(
        functools.partial(_patch_conv_kernel, k=k),
        grid=(rows // R,),
        in_specs=[
            pl.BlockSpec((R, k, nw, kc), lambda i: (i, 0, 0, 0)),
            pl.BlockSpec((k, kc, Cout), lambda i: (0, 0, 0)),
            pl.BlockSpec((1, Cout), lambda i: (0, 0)),
        ],
        out_specs=pl.BlockSpec((R, nw, Cout), lambda i: (i, 0, 0)),
        out_shape=jax.ShapeDtypeStruct((rows, nw, Cout), jnp.bfloat16),
        compiler_params=_PARALLEL,
        cost_estimate=pl.CostEstimate(
            flops=2 * rows * nw * kc * k * Cout, transcendentals=0,
            bytes_accessed=rows * k * nw * kc * 2 + k * kc * Cout * 2
                           + Cout * 4 + rows * nw * Cout * 2),
    )(x5, w, b)
    return out.reshape(B, nh, nw, Cout)


def fpn_level_fused(x_nhwc, wn, bn, prev_nhwc, ws, bs, *, emit_lat=True):
    """Fused FPN level: lateral 1x1 conv + bias + 2x-nearest top-down add of the
    coarser level + the SAM conv_s0/conv_s1 projection, one pallas_call.
    When emit_lat=False (level 0) the full-resolution lateral is never written
    to HBM -- only its projection is."""
    B, H, W, Cin = x_nhwc.shape
    D = wn.shape[1]
    Ds = ws.shape[1]
    assert H % 2 == 0 and W % 2 == 0
    Hc, Wc = H // 2, W // 2
    assert prev_nhwc.shape == (B, Hc, Wc, D)

    # W-axis (column) 2x nearest upsample of the *coarse* tensor, done in XLA/bf16.
    # TODO(synk): fold into the kernel once in-kernel sublane-interleave reshapes
    # are a safe bet; the H-axis upsample stays fused (index_map + broadcast).
    prev_wide = jnp.repeat(prev_nhwc, 2, axis=2)               # (B, Hc, W, D)

    x2 = x_nhwc.reshape(B * H * W, Cin)                        # free reshapes
    prev2 = prev_wide.reshape(B * Hc * W, D)

    rows = B * H
    # R must be even (row pairing) and keep (R*W) a multiple of 16 so every
    # block (incl. the half-size prev block) stays 8-sublane aligned.
    m = 2
    while (m * W) % 16:
        m += 2
    row_bytes = (W * (Cin + D + (D if emit_lat else 0) + Ds) + (W // 2) * D) * 2
    R = _pick_rows(rows, row_bytes, multiple=m)

    out_shapes, out_specs = [], []
    if emit_lat:
        out_shapes.append(jax.ShapeDtypeStruct((B * H * W, D), jnp.bfloat16))
        out_specs.append(pl.BlockSpec((R * W, D), lambda i: (i, 0)))
    out_shapes.append(jax.ShapeDtypeStruct((B * H * W, Ds), jnp.bfloat16))
    out_specs.append(pl.BlockSpec((R * W, Ds), lambda i: (i, 0)))

    flops = 2 * B * H * W * (Cin * D + D * Ds)
    bytes_acc = ((B * H * W * (Cin + Ds) + B * Hc * W * D + Cin * D + D * Ds) * 2
                 + (D + Ds) * 4 + (B * H * W * D * 2 if emit_lat else 0))

    outs = pl.pallas_call(
        functools.partial(_neck_fused_kernel, width=W, emit_lat=emit_lat),
        grid=(rows // R,),
        in_specs=[
            pl.BlockSpec((R * W, Cin), lambda i: (i, 0)),
            pl.BlockSpec((Cin, D), lambda i: (0, 0)),
            pl.BlockSpec((1, D), lambda i: (0, 0)),
            pl.BlockSpec((R * W // 2, D), lambda i: (i, 0)),   # coarse rows, 2x via broadcast
            pl.BlockSpec((D, Ds), lambda i: (0, 0)),
            pl.BlockSpec((1, Ds), lambda i: (0, 0)),
        ],
        out_specs=out_specs,
        out_shape=out_shapes,
        compiler_params=_PARALLEL,
        cost_estimate=pl.CostEstimate(flops=flops, transcendentals=0,
                                      bytes_accessed=bytes_acc),
    )(x2, wn, bn, prev2, ws, bs)

    if emit_lat:
        lat2d, proj2d = outs
        return lat2d.reshape(B, H, W, D), proj2d.reshape(B, H, W, Ds)
    proj2d = outs[0] if isinstance(outs, (list, tuple)) else outs
    return None, proj2d.reshape(B, H, W, Ds)


# --------------------------- positional encoding ----------------------------

def position_encoding_sine(shape, num_pos_feats, temperature=10000.0):
    """SAM2 PositionEmbeddingSine (normalize=True). Returns (B, num_pos_feats, H, W).
    Shape-only (no parameters / data): precomputed once per resolution."""
    B, _, H, W = shape
    npf = num_pos_feats // 2
    eps = 1e-6
    scale = 2.0 * math.pi
    y_embed = jnp.broadcast_to(
        jnp.arange(1, H + 1, dtype=jnp.float32).reshape(1, H, 1), (B, H, W))
    x_embed = jnp.broadcast_to(
        jnp.arange(1, W + 1, dtype=jnp.float32).reshape(1, 1, W), (B, H, W))
    y_embed = y_embed / (y_embed[:, -1:, :] + eps) * scale
    x_embed = x_embed / (x_embed[:, :, -1:] + eps) * scale
    dim_t = jnp.arange(npf, dtype=jnp.float32)
    dim_t = temperature ** (2.0 * jnp.floor(dim_t / 2.0) / npf)
    pos_x = x_embed[:, :, :, None] / dim_t
    pos_y = y_embed[:, :, :, None] / dim_t
    pos_x = jnp.stack([jnp.sin(pos_x[:, :, :, 0::2]),
                       jnp.cos(pos_x[:, :, :, 1::2])], axis=4).reshape(B, H, W, -1)
    pos_y = jnp.stack([jnp.sin(pos_y[:, :, :, 0::2]),
                       jnp.cos(pos_y[:, :, :, 1::2])], axis=4).reshape(B, H, W, -1)
    return jnp.concatenate([pos_y, pos_x], axis=3).transpose(0, 3, 1, 2)


# -------------------------- parameters (synthetic) --------------------------

D_MODEL = 32                       # FPN / transformer dim (256 in real SAM2)
TRUNK_CHANNELS = (32, 64, 128)     # per-stage trunk channels
TRUNK_STRIDES = (4, 2, 2)          # stage0 patch-embed 4x4/4, then 2x2/2 merges


def init_params(key):
    """Deterministic synthetic weights in PyTorch conv layout (Cout, Cin, k, k)."""
    params = {}
    keys = iter(jax.random.split(key, 32))

    def conv_init(cout, cin, k):
        fan_in = cin * k * k
        w = jax.random.normal(next(keys), (cout, cin, k, k), jnp.float32) / math.sqrt(fan_in)
        b = jax.random.normal(next(keys), (cout,), jnp.float32) * 0.01
        return w, b

    cin = 3
    for i, (c, s) in enumerate(zip(TRUNK_CHANNELS, TRUNK_STRIDES)):
        params[f"stage{i}_w"], params[f"stage{i}_b"] = conv_init(c, cin, s)
        cin = c
    for i, c in enumerate(TRUNK_CHANNELS):
        params[f"neck{i}_w"], params[f"neck{i}_b"] = conv_init(D_MODEL, c, 1)
    params["conv_s0_w"], params["conv_s0_b"] = conv_init(D_MODEL // 8, D_MODEL, 1)
    params["conv_s1_w"], params["conv_s1_b"] = conv_init(D_MODEL // 4, D_MODEL, 1)
    return params


def prepare_params(params):
    """One-time weight repack into matmul-ready bf16 layouts, f32 (1, N) biases."""
    p = {}
    # stage 0: im2col layout (k*k*Cin, Cout)
    k0 = TRUNK_STRIDES[0]
    w0 = jnp.transpose(params["stage0_w"], (2, 3, 1, 0))               # (k,k,Cin,Cout)
    p["stage0_w"] = w0.reshape(k0 * k0 * w0.shape[2], w0.shape[3]).astype(jnp.bfloat16)
    p["stage0_b"] = params["stage0_b"].reshape(1, -1).astype(jnp.float32)
    # stages 1..: folded-tap layout (k, k*Cin, Cout)
    for i in range(1, len(TRUNK_STRIDES)):
        k = TRUNK_STRIDES[i]
        w = jnp.transpose(params[f"stage{i}_w"], (2, 3, 1, 0))         # (k,k,Cin,Cout)
        p[f"stage{i}_w"] = w.reshape(k, k * w.shape[2], w.shape[3]).astype(jnp.bfloat16)
        p[f"stage{i}_b"] = params[f"stage{i}_b"].reshape(1, -1).astype(jnp.float32)
    for i in range(len(TRUNK_CHANNELS)):
        w = params[f"neck{i}_w"]                                       # (D, Cin, 1, 1)
        p[f"neck{i}_w"] = w.reshape(w.shape[0], w.shape[1]).T.astype(jnp.bfloat16)
        p[f"neck{i}_b"] = params[f"neck{i}_b"].reshape(1, -1).astype(jnp.float32)
    for name in ("conv_s0", "conv_s1"):
        w = params[f"{name}_w"]
        p[f"{name}_w"] = w.reshape(w.shape[0], w.shape[1]).T.astype(jnp.bfloat16)
        p[f"{name}_b"] = params[f"{name}_b"].reshape(1, -1).astype(jnp.float32)
    return p


def precompute_pos_encodings(B, H, W):
    """Sine pos-enc for every FPN level resolution; computed once, reused per frame."""
    encs = []
    h, w = H, W
    for s in TRUNK_STRIDES:
        h, w = h // s, w // s
        encs.append(position_encoding_sine((B, D_MODEL, h, w), D_MODEL))
    return tuple(encs)


# ------------------------------ forward pass --------------------------------

def sam_video_frame_encoder_forward(image_nchw, params, pos_encs):
    """image: (B, 3, H, W) f32 NCHW (PyTorch layout at the boundary only).
    Returns (backbone_fpn [NCHW f32], vision_pos_enc [NCHW f32], vision_features)."""
    # single layout/dtype conversion at the boundary; NHWC + bf16 inside
    x = jnp.transpose(image_nchw, (0, 2, 3, 1)).astype(jnp.bfloat16)

    # --- trunk: hierarchical features at strides 4 / 8 / 16 ---
    feats = []
    x = patch_embed_im2col(x, params["stage0_w"], params["stage0_b"], TRUNK_STRIDES[0])
    feats.append(x)
    for i in range(1, len(TRUNK_STRIDES)):
        x = patch_conv_nhwc(x, params[f"stage{i}_w"], params[f"stage{i}_b"],
                            TRUNK_STRIDES[i])
        feats.append(x)
    # TODO(synk): real SAM2 trunk is a Hiera ViT; modeled here as patch-merging conv stages.

    # --- FPN neck (top-down), fused with the SAM high-res projections ---
    # level 2 (coarsest): lateral 1x1 conv only; this is also vision_features
    x2 = feats[2]
    B, H2, W2, C2 = x2.shape
    lat2 = matmul_bias(x2.reshape(B * H2 * W2, C2), params["neck2_w"], params["neck2_b"],
                       out_dtype=jnp.bfloat16).reshape(B, H2, W2, D_MODEL)

    # level 1: lateral + upsample(lat2) add + conv_s1 projection (lat1 is prev of level 0)
    lat1, proj1 = fpn_level_fused(feats[1], params["neck1_w"], params["neck1_b"],
                                  lat2, params["conv_s1_w"], params["conv_s1_b"],
                                  emit_lat=True)
    # level 0: lateral + upsample(lat1) add + conv_s0 projection.  The lateral map
    # itself is never consumed by the module, so it is NOT written to HBM.
    _, proj0 = fpn_level_fused(feats[0], params["neck0_w"], params["neck0_b"],
                               lat1, params["conv_s0_w"], params["conv_s0_b"],
                               emit_lat=False)

    # back to NCHW / f32 only at the external API boundary (single fused XLA op each)
    to_nchw = lambda t: jnp.transpose(t, (0, 3, 1, 2)).astype(jnp.float32)
    backbone_fpn = [to_nchw(proj0), to_nchw(proj1), to_nchw(lat2)]
    vision_features = backbone_fpn[2]
    vision_pos_enc = list(pos_encs)
    return backbone_fpn, vision_pos_enc, vision_features


# ---------------------------------- main -------------------------------------

if __name__ == "__main__":
    key = jax.random.PRNGKey(0)
    k_img, k_par = jax.random.split(key)

    B, C, H, W = 2, 3, 32, 32
    image = jax.random.normal(k_img, (B, C, H, W), jnp.float32)
    params = prepare_params(init_params(k_par))
    # pos-enc depends only on shape: precompute once, reuse across video frames
    pos_encs = precompute_pos_encodings(B, H, W)

    fwd = jax.jit(functools.partial(sam_video_frame_encoder_forward, pos_encs=pos_encs))
    backbone_fpn, vision_pos_enc, vision_features = fwd(image, params)
    jax.block_until_ready((backbone_fpn, vision_pos_enc, vision_features))

    # sanity checks on shapes implied by the module
    assert backbone_fpn[0].shape == (B, D_MODEL // 8, H // 4, W // 4)
    assert backbone_fpn[1].shape == (B, D_MODEL // 4, H // 8, W // 8)
    assert backbone_fpn[2].shape == (B, D_MODEL, H // 16, W // 16)
    assert vision_features.shape == (B, D_MODEL, H // 16, W // 16)
    assert all(p.shape[1] == D_MODEL for p in vision_pos_enc)

    print("KERNEL_OK")
</pallas_src>

<mosaic_0001>
module attributes {stable_mosaic.version = 11 : i64} {
  func.func @_patch_conv_kernel(%arg0: i32, %arg1: memref<8x2x4x64xbf16, #tpu.memory_space<vmem>>, %arg2: memref<2x64x64xbf16, #tpu.memory_space<vmem>>, %arg3: memref<1x64xf32, #tpu.memory_space<vmem>>, %arg4: memref<8x4x64xbf16, #tpu.memory_space<vmem>>) attributes {dimension_semantics = [#tpu.dimension_semantics<parallel>], iteration_bounds = array<i64: 1>, scalar_prefetch = 0 : i64, scratch_operands = 0 : i64, tpu.core_type = #tpu.core_type<tc>, window_params = [{transform_indices = @transform_0, window_bounds = array<i64: 8, 2, 4, 64>}, {pipeline_mode = #tpu.pipeline_mode<synchronous>, transform_indices = @transform_1, window_bounds = array<i64: 2, 64, 64>}, {pipeline_mode = #tpu.pipeline_mode<synchronous>, transform_indices = @transform_2, window_bounds = array<i64: 1, 64>}, {transform_indices = @transform_3, window_bounds = array<i64: 8, 4, 64>}]} {
    %cst = arith.constant 0.000000e+00 : f32
    %0 = vector.broadcast %cst : f32 to vector<32x64xf32>
    %c0 = arith.constant 0 : index
    %c0_0 = arith.constant 0 : index
    %c0_1 = arith.constant 0 : index
    %c0_2 = arith.constant 0 : index
    %1 = vector.load %arg1[%c0, %c0_0, %c0_1, %c0_2] : memref<8x2x4x64xbf16, #tpu.memory_space<vmem>>, vector<8x1x4x64xbf16>
    %2 = vector.shape_cast %1 : vector<8x1x4x64xbf16> to vector<8x4x64xbf16>
    %3 = vector.shape_cast %2 : vector<8x4x64xbf16> to vector<32x64xbf16>
    %c0_3 = arith.constant 0 : index
    %c0_4 = arith.constant 0 : index
    %c0_5 = arith.constant 0 : index
    %4 = vector.load %arg2[%c0_3, %c0_4, %c0_5] : memref<2x64x64xbf16, #tpu.memory_space<vmem>>, vector<1x64x64xbf16>
    %5 = vector.shape_cast %4 : vector<1x64x64xbf16> to vector<64x64xbf16>
    %cst_6 = arith.constant dense<0.000000e+00> : vector<32x64xf32>
    %6 = tpu.matmul %3, %5, %cst_6 {dimension_numbers = #tpu.dot_dimension_numbers<[1], [0], [0], [1], [0, 0, 1, 1], [], []>} : vector<32x64xbf16>, vector<64x64xbf16>, vector<32x64xf32> -> vector<32x64xf32>
    %7 = arith.addf %0, %6 : vector<32x64xf32>
    %c0_7 = arith.constant 0 : index
    %c1 = arith.constant 1 : index
    %c0_8 = arith.constant 0 : index
    %c0_9 = arith.constant 0 : index
    %8 = vector.load %arg1[%c0_7, %c1, %c0_8, %c0_9] : memref<8x2x4x64xbf16, #tpu.memory_space<vmem>>, vector<8x1x4x64xbf16>
    %9 = vector.shape_cast %8 : vector<8x1x4x64xbf16> to vector<8x4x64xbf16>
    %10 = vector.shape_cast %9 : vector<8x4x64xbf16> to vector<32x64xbf16>
    %c1_10 = arith.constant 1 : index
    %c0_11 = arith.constant 0 : index
    %c0_12 = arith.constant 0 : index
    %11 = vector.load %arg2[%c1_10, %c0_11, %c0_12] : memref<2x64x64xbf16, #tpu.memory_space<vmem>>, vector<1x64x64xbf16>
    %12 = vector.shape_cast %11 : vector<1x64x64xbf16> to vector<64x64xbf16>
    %cst_13 = arith.constant dense<0.000000e+00> : vector<32x64xf32>
    %13 = tpu.matmul %10, %12, %cst_13 {dimension_numbers = #tpu.dot_dimension_numbers<[1], [0], [0], [1], [0, 0, 1, 1], [], []>} : vector<32x64xbf16>, vector<64x64xbf16>, vector<32x64xf32> -> vector<32x64xf32>
    %14 = arith.addf %7, %13 : vector<32x64xf32>
    %c0_14 = arith.constant 0 : index
    %c0_15 = arith.constant 0 : index
    %15 = vector.load %arg3[%c0_14, %c0_15] : memref<1x64xf32, #tpu.memory_space<vmem>>, vector<1x64xf32>
    %16 = vector.broadcast %15 : vector<1x64xf32> to vector<32x64xf32>
    %17 = arith.addf %14, %16 : vector<32x64xf32>
    %18 = vector.shape_cast %17 : vector<32x64xf32> to vector<8x4x64xf32>
    %19 = arith.truncf %18 : vector<8x4x64xf32> to vector<8x4x64xbf16>
    %c0_16 = arith.constant 0 : index
    %c0_17 = arith.constant 0 : index
    %c0_18 = arith.constant 0 : index
    %20 = vector.load %arg4[%c0_16, %c0_17, %c0_18] : memref<8x4x64xbf16, #tpu.memory_space<vmem>>, vector<8x4x64xbf16>
    tpu.vector_store %arg4[%c0_16, %c0_17, %c0_18], %19 {strides = array<i32>} : memref<8x4x64xbf16, #tpu.memory_space<vmem>>, vector<8x4x64xbf16>,
    return
  }
  func.func @transform_0(%arg0: i32) -> (i32, i32, i32, i32) {
    %c0_i32 = arith.constant 0 : i32
    %c0_i32_0 = arith.constant 0 : i32
    %c0_i32_1 = arith.constant 0 : i32
    %c0_i32_2 = arith.constant 0 : i32
    return %arg0, %c0_i32, %c0_i32_0, %c0_i32_1 : i32, i32, i32, i32
  }
  func.func @transform_1(%arg0: i32) -> (i32, i32, i32) {
    %c0_i32 = arith.constant 0 : i32
    %c0_i32_0 = arith.constant 0 : i32
    %c0_i32_1 = arith.constant 0 : i32
    %c0_i32_2 = arith.constant 0 : i32
    return %c0_i32, %c0_i32_0, %c0_i32_1 : i32, i32, i32
  }
  func.func @transform_2(%arg0: i32) -> (i32, i32) {
    %c0_i32 = arith.constant 0 : i32
    %c0_i32_0 = arith.constant 0 : i32
    %c0_i32_1 = arith.constant 0 : i32
    return %c0_i32, %c0_i32_0 : i32, i32
  }
  func.func @transform_3(%arg0: i32) -> (i32, i32, i32) {
    %c0_i32 = arith.constant 0 : i32
    %c0_i32_0 = arith.constant 0 : i32
    %c0_i32_1 = arith.constant 0 : i32
    return %arg0, %c0_i32, %c0_i32_0 : i32, i32, i32
  }
}

module attributes {stable_mosaic.version = 11 : i64} {
  func.func @_patch_conv_kernel(%arg0: i32, %arg1: memref<4x2x2x128xbf16, #tpu.memory_space<vmem>>, %arg2: memref<2x128x128xbf16, #tpu.memory_space<vmem>>, %arg3: memref<1x128xf32, #tpu.memory_space<vmem>>, %arg4: memref<4x2x128xbf16, #tpu.memory_space<vmem>>) attributes {dimension_semantics = [#tpu.dimension_semantics<parallel>], iteration_bounds = array<i64: 1>, scalar_prefetch = 0 : i64, scratch_operands = 0 : i64, tpu.core_type = #tpu.core_type<tc>, window_params = [{transform_indices = @transform_0, window_bounds = array<i64: 4, 2, 2, 128>}, {pipeline_mode = #tpu.pipeline_mode<synchronous>, transform_indices = @transform_1, window_bounds = array<i64: 2, 128, 128>}, {pipeline_mode = #tpu.pipeline_mode<synchronous>, transform_indices = @transform_2, window_bounds = array<i64: 1, 128>}, {transform_indices = @transform_3, window_bounds = array<i64: 4, 2, 128>}]} {
    %cst = arith.constant 0.000000e+00 : f32
    %0 = vector.broadcast %cst : f32 to vector<8x128xf32>
    %c0 = arith.constant 0 : index
    %c0_0 = arith.constant 0 : index
    %c0_1 = arith.constant 0 : index
    %c0_2 = arith.constant 0 : index
    %1 = vector.load %arg1[%c0, %c0_0, %c0_1, %c0_2] : memref<4x2x2x128xbf16, #tpu.memory_space<vmem>>, vector<4x1x2x128xbf16>
    %2 = vector.shape_cast %1 : vector<4x1x2x128xbf16> to vector<4x2x128xbf16>
    %3 = vector.shape_cast %2 : vector<4x2x128xbf16> to vector<8x128xbf16>
    %c0_3 = arith.constant 0 : index
    %c0_4 = arith.constant 0 : index
    %c0_5 = arith.constant 0 : index
    %4 = vector.load %arg2[%c0_3, %c0_4, %c0_5] : memref<2x128x128xbf16, #tpu.memory_space<vmem>>, vector<1x128x128xbf16>
    %5 = vector.shape_cast %4 : vector<1x128x128xbf16> to vector<128x128xbf16>
    %cst_6 = arith.constant dense<0.000000e+00> : vector<8x128xf32>
    %6 = tpu.matmul %3, %5, %cst_6 {dimension_numbers = #tpu.dot_dimension_numbers<[1], [0], [0], [1], [0, 0, 1, 1], [], []>} : vector<8x128xbf16>, vector<128x128xbf16>, vector<8x128xf32> -> vector<8x128xf32>
    %7 = arith.addf %0, %6 : vector<8x128xf32>
    %c0_7 = arith.constant 0 : index
    %c1 = arith.constant 1 : index
    %c0_8 = arith.constant 0 : index
    %c0_9 = arith.constant 0 : index
    %8 = vector.load %arg1[%c0_7, %c1, %c0_8, %c0_9] : memref<4x2x2x128xbf16, #tpu.memory_space<vmem>>, vector<4x1x2x128xbf16>
    %9 = vector.shape_cast %8 : vector<4x1x2x128xbf16> to vector<4x2x128xbf16>
    %10 = vector.shape_cast %9 : vector<4x2x128xbf16> to vector<8x128xbf16>
    %c1_10 = arith.constant 1 : index
    %c0_11 = arith.constant 0 : index
    %c0_12 = arith.constant 0 : index
    %11 = vector.load %arg2[%c1_10, %c0_11, %c0_12] : memref<2x128x128xbf16, #tpu.memory_space<vmem>>, vector<1x128x128xbf16>
    %12 = vector.shape_cast %11 : vector<1x128x128xbf16> to vector<128x128xbf16>
    %cst_13 = arith.constant dense<0.000000e+00> : vector<8x128xf32>
    %13 = tpu.matmul %10, %12, %cst_13 {dimension_numbers = #tpu.dot_dimension_numbers<[1], [0], [0], [1], [0, 0, 1, 1], [], []>} : vector<8x128xbf16>, vector<128x128xbf16>, vector<8x128xf32> -> vector<8x128xf32>
    %14 = arith.addf %7, %13 : vector<8x128xf32>
    %c0_14 = arith.constant 0 : index
    %c0_15 = arith.constant 0 : index
    %15 = vector.load %arg3[%c0_14, %c0_15] : memref<1x128xf32, #tpu.memory_space<vmem>>, vector<1x128xf32>
    %16 = vector.broadcast %15 : vector<1x128xf32> to vector<8x128xf32>
    %17 = arith.addf %14, %16 : vector<8x128xf32>
    %18 = vector.shape_cast %17 : vector<8x128xf32> to vector<4x2x128xf32>
    %19 = arith.truncf %18 : vector<4x2x128xf32> to vector<4x2x128xbf16>
    %c0_16 = arith.constant 0 : index
    %c0_17 = arith.constant 0 : index
    %c0_18 = arith.constant 0 : index
    %20 = vector.load %arg4[%c0_16, %c0_17, %c0_18] : memref<4x2x128xbf16, #tpu.memory_space<vmem>>, vector<4x2x128xbf16>
    tpu.vector_store %arg4[%c0_16, %c0_17, %c0_18], %19 {strides = array<i32>} : memref<4x2x128xbf16, #tpu.memory_space<vmem>>, vector<4x2x128xbf16>,
    return
  }
  func.func @transform_0(%arg0: i32) -> (i32, i32, i32, i32) {
    %c0_i32 = arith.constant 0 : i32
    %c0_i32_0 = arith.constant 0 : i32
    %c0_i32_1 = arith.constant 0 : i32
    %c0_i32_2 = arith.constant 0 : i32
    return %arg0, %c0_i32, %c0_i32_0, %c0_i32_1 : i32, i32, i32, i32
  }
  func.func @transform_1(%arg0: i32) -> (i32, i32, i32) {
    %c0_i32 = arith.constant 0 : i32
    %c0_i32_0 = arith.constant 0 : i32
    %c0_i32_1 = arith.constant 0 : i32
    %c0_i32_2 = arith.constant 0 : i32
    return %c0_i32, %c0_i32_0, %c0_i32_1 : i32, i32, i32
  }
  func.func @transform_2(%arg0: i32) -> (i32, i32) {
    %c0_i32 = arith.constant 0 : i32
    %c0_i32_0 = arith.constant 0 : i32
    %c0_i32_1 = arith.constant 0 : i32
    return %c0_i32, %c0_i32_0 : i32, i32
  }
  func.func @transform_3(%arg0: i32) -> (i32, i32, i32) {
    %c0_i32 = arith.constant 0 : i32
    %c0_i32_0 = arith.constant 0 : i32
    %c0_i32_1 = arith.constant 0 : i32
    return %arg0, %c0_i32, %c0_i32_0 : i32, i32, i32
  }
}

module attributes {stable_mosaic.version = 11 : i64} {
  func.func @_matmul_bias_kernel(%arg0: i32, %arg1: memref<128x48xbf16, #tpu.memory_space<vmem>>, %arg2: memref<48x32xbf16, #tpu.memory_space<vmem>>, %arg3: memref<1x32xf32, #tpu.memory_space<vmem>>, %arg4: memref<128x32xbf16, #tpu.memory_space<vmem>>) attributes {dimension_semantics = [#tpu.dimension_semantics<parallel>], iteration_bounds = array<i64: 1>, scalar_prefetch = 0 : i64, scratch_operands = 0 : i64, tpu.core_type = #tpu.core_type<tc>, window_params = [{transform_indices = @transform_0, window_bounds = array<i64: 128, 48>}, {pipeline_mode = #tpu.pipeline_mode<synchronous>, transform_indices = @transform_1, window_bounds = array<i64: 48, 32>}, {pipeline_mode = #tpu.pipeline_mode<synchronous>, transform_indices = @transform_2, window_bounds = array<i64: 1, 32>}, {transform_indices = @transform_3, window_bounds = array<i64: 128, 32>}]} {
    %c0 = arith.constant 0 : index
    %c0_0 = arith.constant 0 : index
    %0 = vector.load %arg1[%c0, %c0_0] : memref<128x48xbf16, #tpu.memory_space<vmem>>, vector<128x48xbf16>
    %c0_1 = arith.constant 0 : index
    %c0_2 = arith.constant 0 : index
    %1 = vector.load %arg2[%c0_1, %c0_2] : memref<48x32xbf16, #tpu.memory_space<vmem>>, vector<48x32xbf16>
    %cst = arith.constant dense<0.000000e+00> : vector<128x32xf32>
    %2 = tpu.matmul %0, %1, %cst {dimension_numbers = #tpu.dot_dimension_numbers<[1], [0], [0], [1], [0, 0, 1, 1], [], []>} : vector<128x48xbf16>, vector<48x32xbf16>, vector<128x32xf32> -> vector<128x32xf32>
    %c0_3 = arith.constant 0 : index
    %c0_4 = arith.constant 0 : index
    %3 = vector.load %arg3[%c0_3, %c0_4] : memref<1x32xf32, #tpu.memory_space<vmem>>, vector<1x32xf32>
    %4 = vector.broadcast %3 : vector<1x32xf32> to vector<128x32xf32>
    %5 = arith.addf %2, %4 : vector<128x32xf32>
    %6 = arith.truncf %5 : vector<128x32xf32> to vector<128x32xbf16>
    %c0_5 = arith.constant 0 : index
    %c0_6 = arith.constant 0 : index
    %7 = vector.load %arg4[%c0_5, %c0_6] : memref<128x32xbf16, #tpu.memory_space<vmem>>, vector<128x32xbf16>
    tpu.vector_store %arg4[%c0_5, %c0_6], %6 {strides = array<i32>} : memref<128x32xbf16, #tpu.memory_space<vmem>>, vector<128x32xbf16>,
    return
  }
  func.func @transform_0(%arg0: i32) -> (i32, i32) {
    %c0_i32 = arith.constant 0 : i32
    %c0_i32_0 = arith.constant 0 : i32
    return %arg0, %c0_i32 : i32, i32
  }
  func.func @transform_1(%arg0: i32) -> (i32, i32) {
    %c0_i32 = arith.constant 0 : i32
    %c0_i32_0 = arith.constant 0 : i32
    %c0_i32_1 = arith.constant 0 : i32
    return %c0_i32, %c0_i32_0 : i32, i32
  }
  func.func @transform_2(%arg0: i32) -> (i32, i32) {
    %c0_i32 = arith.constant 0 : i32
    %c0_i32_0 = arith.constant 0 : i32
    %c0_i32_1 = arith.constant 0 : i32
    return %c0_i32, %c0_i32_0 : i32, i32
  }
  func.func @transform_3(%arg0: i32) -> (i32, i32) {
    %c0_i32 = arith.constant 0 : i32
    %c0_i32_0 = arith.constant 0 : i32
    return %arg0, %c0_i32 : i32, i32
  }
}

module attributes {stable_mosaic.version = 11 : i64} {
  func.func @_matmul_bias_kernel(%arg0: i32, %arg1: memref<8x128xbf16, #tpu.memory_space<vmem>>, %arg2: memref<128x32xbf16, #tpu.memory_space<vmem>>, %arg3: memref<1x32xf32, #tpu.memory_space<vmem>>, %arg4: memref<8x32xbf16, #tpu.memory_space<vmem>>) attributes {dimension_semantics = [#tpu.dimension_semantics<parallel>], iteration_bounds = array<i64: 1>, scalar_prefetch = 0 : i64, scratch_operands = 0 : i64, tpu.core_type = #tpu.core_type<tc>, window_params = [{transform_indices = @transform_0, window_bounds = array<i64: 8, 128>}, {pipeline_mode = #tpu.pipeline_mode<synchronous>, transform_indices = @transform_1, window_bounds = array<i64: 128, 32>}, {pipeline_mode = #tpu.pipeline_mode<synchronous>, transform_indices = @transform_2, window_bounds = array<i64: 1, 32>}, {transform_indices = @transform_3, window_bounds = array<i64: 8, 32>}]} {
    %c0 = arith.constant 0 : index
    %c0_0 = arith.constant 0 : index
    %0 = vector.load %arg1[%c0, %c0_0] : memref<8x128xbf16, #tpu.memory_space<vmem>>, vector<8x128xbf16>
    %c0_1 = arith.constant 0 : index
    %c0_2 = arith.constant 0 : index
    %1 = vector.load %arg2[%c0_1, %c0_2] : memref<128x32xbf16, #tpu.memory_space<vmem>>, vector<128x32xbf16>
    %cst = arith.constant dense<0.000000e+00> : vector<8x32xf32>
    %2 = tpu.matmul %0, %1, %cst {dimension_numbers = #tpu.dot_dimension_numbers<[1], [0], [0], [1], [0, 0, 1, 1], [], []>} : vector<8x128xbf16>, vector<128x32xbf16>, vector<8x32xf32> -> vector<8x32xf32>
    %c0_3 = arith.constant 0 : index
    %c0_4 = arith.constant 0 : index
    %3 = vector.load %arg3[%c0_3, %c0_4] : memref<1x32xf32, #tpu.memory_space<vmem>>, vector<1x32xf32>
    %4 = vector.broadcast %3 : vector<1x32xf32> to vector<8x32xf32>
    %5 = arith.addf %2, %4 : vector<8x32xf32>
    %6 = arith.truncf %5 : vector<8x32xf32> to vector<8x32xbf16>
    %c0_5 = arith.constant 0 : index
    %c0_6 = arith.constant 0 : index
    %7 = vector.load %arg4[%c0_5, %c0_6] : memref<8x32xbf16, #tpu.memory_space<vmem>>, vector<8x32xbf16>
    tpu.vector_store %arg4[%c0_5, %c0_6], %6 {strides = array<i32>} : memref<8x32xbf16, #tpu.memory_space<vmem>>, vector<8x32xbf16>,
    return
  }
  func.func @transform_0(%arg0: i32) -> (i32, i32) {
    %c0_i32 = arith.constant 0 : i32
    %c0_i32_0 = arith.constant 0 : i32
    return %arg0, %c0_i32 : i32, i32
  }
  func.func @transform_1(%arg0: i32) -> (i32, i32) {
    %c0_i32 = arith.constant 0 : i32
    %c0_i32_0 = arith.constant 0 : i32
    %c0_i32_1 = arith.constant 0 : i32
    return %c0_i32, %c0_i32_0 : i32, i32
  }
  func.func @transform_2(%arg0: i32) -> (i32, i32) {
    %c0_i32 = arith.constant 0 : i32
    %c0_i32_0 = arith.constant 0 : i32
    %c0_i32_1 = arith.constant 0 : i32
    return %c0_i32, %c0_i32_0 : i32, i32
  }
  func.func @transform_3(%arg0: i32) -> (i32, i32) {
    %c0_i32 = arith.constant 0 : i32
    %c0_i32_0 = arith.constant 0 : i32
    return %arg0, %c0_i32 : i32, i32
  }
}

module attributes {stable_mosaic.version = 11 : i64} {
  func.func @_neck_fused_kernel(%arg0: i32, %arg1: memref<32x64xbf16, #tpu.memory_space<vmem>>, %arg2: memref<64x32xbf16, #tpu.memory_space<vmem>>, %arg3: memref<1x32xf32, #tpu.memory_space<vmem>>, %arg4: memref<16x32xbf16, #tpu.memory_space<vmem>>, %arg5: memref<32x8xbf16, #tpu.memory_space<vmem>>, %arg6: memref<1x8xf32, #tpu.memory_space<vmem>>, %arg7: memref<32x32xbf16, #tpu.memory_space<vmem>>, %arg8: memref<32x8xbf16, #tpu.memory_space<vmem>>) attributes {dimension_semantics = [#tpu.dimension_semantics<parallel>], iteration_bounds = array<i64: 1>, scalar_prefetch = 0 : i64, scratch_operands = 0 : i64, tpu.core_type = #tpu.core_type<tc>, window_params = [{transform_indices = @transform_0, window_bounds = array<i64: 32, 64>}, {pipeline_mode = #tpu.pipeline_mode<synchronous>, transform_indices = @transform_1, window_bounds = array<i64: 64, 32>}, {pipeline_mode = #tpu.pipeline_mode<synchronous>, transform_indices = @transform_2, window_bounds = array<i64: 1, 32>}, {transform_indices = @transform_3, window_bounds = array<i64: 16, 32>}, {pipeline_mode = #tpu.pipeline_mode<synchronous>, transform_indices = @transform_4, window_bounds = array<i64: 32, 8>}, {pipeline_mode = #tpu.pipeline_mode<synchronous>, transform_indices = @transform_5, window_bounds = array<i64: 1, 8>}, {transform_indices = @transform_6, window_bounds = array<i64: 32, 32>}, {transform_indices = @transform_7, window_bounds = array<i64: 32, 8>}]} {
    %c0 = arith.constant 0 : index
    %c0_0 = arith.constant 0 : index
    %0 = vector.load %arg1[%c0, %c0_0] : memref<32x64xbf16, #tpu.memory_space<vmem>>, vector<32x64xbf16>
    %c0_1 = arith.constant 0 : index
    %c0_2 = arith.constant 0 : index
    %1 = vector.load %arg2[%c0_1, %c0_2] : memref<64x32xbf16, #tpu.memory_space<vmem>>, vector<64x32xbf16>
    %cst = arith.constant dense<0.000000e+00> : vector<32x32xf32>
    %2 = tpu.matmul %0, %1, %cst {dimension_numbers = #tpu.dot_dimension_numbers<[1], [0], [0], [1], [0, 0, 1, 1], [], []>} : vector<32x64xbf16>, vector<64x32xbf16>, vector<32x32xf32> -> vector<32x32xf32>
    %c0_3 = arith.constant 0 : index
    %c0_4 = arith.constant 0 : index
    %3 = vector.load %arg3[%c0_3, %c0_4] : memref<1x32xf32, #tpu.memory_space<vmem>>, vector<1x32xf32>
    %4 = vector.broadcast %3 : vector<1x32xf32> to vector<32x32xf32>
    %5 = arith.addf %2, %4 : vector<32x32xf32>
    %c0_5 = arith.constant 0 : index
    %c0_6 = arith.constant 0 : index
    %6 = vector.load %arg4[%c0_5, %c0_6] : memref<16x32xbf16, #tpu.memory_space<vmem>>, vector<16x32xbf16>
    %7 = arith.extf %6 : vector<16x32xbf16> to vector<16x32xf32>
    %8 = vector.shape_cast %7 : vector<16x32xf32> to vector<4x1x4x32xf32>
    %9 = vector.shape_cast %8 : vector<4x1x4x32xf32> to vector<4x1x4x32xf32>
    %10 = vector.broadcast %9 : vector<4x1x4x32xf32> to vector<4x2x4x32xf32>
    %11 = vector.shape_cast %10 : vector<4x2x4x32xf32> to vector<32x32xf32>
    %12 = arith.addf %5, %11 : vector<32x32xf32>
    %13 = arith.truncf %12 : vector<32x32xf32> to vector<32x32xbf16>
    %c0_7 = arith.constant 0 : index
    %c0_8 = arith.constant 0 : index
    %14 = vector.load %arg7[%c0_7, %c0_8] : memref<32x32xbf16, #tpu.memory_space<vmem>>, vector<32x32xbf16>
    tpu.vector_store %arg7[%c0_7, %c0_8], %13 {strides = array<i32>} : memref<32x32xbf16, #tpu.memory_space<vmem>>, vector<32x32xbf16>,
    %15 = arith.truncf %12 : vector<32x32xf32> to vector<32x32xbf16>
    %c0_9 = arith.constant 0 : index
    %c0_10 = arith.constant 0 : index
    %16 = vector.load %arg5[%c0_9, %c0_10] : memref<32x8xbf16, #tpu.memory_space<vmem>>, vector<32x8xbf16>
    %cst_11 = arith.constant dense<0.000000e+00> : vector<32x8xf32>
    %17 = tpu.matmul %15, %16, %cst_11 {dimension_numbers = #tpu.dot_dimension_numbers<[1], [0], [0], [1], [0, 0, 1, 1], [], []>} : vector<32x32xbf16>, vector<32x8xbf16>, vector<32x8xf32> -> vector<32x8xf32>
    %c0_12 = arith.constant 0 : index
    %c0_13 = arith.constant 0 : index
    %18 = vector.load %arg6[%c0_12, %c0_13] : memref<1x8xf32, #tpu.memory_space<vmem>>, vector<1x8xf32>
    %19 = vector.broadcast %18 : vector<1x8xf32> to vector<32x8xf32>
    %20 = arith.addf %17, %19 : vector<32x8xf32>
    %21 = arith.truncf %20 : vector<32x8xf32> to vector<32x8xbf16>
    %c0_14 = arith.constant 0 : index
    %c0_15 = arith.constant 0 : index
    %22 = vector.load %arg8[%c0_14, %c0_15] : memref<32x8xbf16, #tpu.memory_space<vmem>>, vector<32x8xbf16>
    tpu.vector_store %arg8[%c0_14, %c0_15], %21 {strides = array<i32>} : memref<32x8xbf16, #tpu.memory_space<vmem>>, vector<32x8xbf16>,
    return
  }
  func.func @transform_0(%arg0: i32) -> (i32, i32) {
    %c0_i32 = arith.constant 0 : i32
    %c0_i32_0 = arith.constant 0 : i32
    return %arg0, %c0_i32 : i32, i32
  }
  func.func @transform_1(%arg0: i32) -> (i32, i32) {
    %c0_i32 = arith.constant 0 : i32
    %c0_i32_0 = arith.constant 0 : i32
    %c0_i32_1 = arith.constant 0 : i32
    return %c0_i32, %c0_i32_0 : i32, i32
  }
  func.func @transform_2(%arg0: i32) -> (i32, i32) {
    %c0_i32 = arith.constant 0 : i32
    %c0_i32_0 = arith.constant 0 : i32
    %c0_i32_1 = arith.constant 0 : i32
    return %c0_i32, %c0_i32_0 : i32, i32
  }
  func.func @transform_3(%arg0: i32) -> (i32, i32) {
    %c0_i32 = arith.constant 0 : i32
    %c0_i32_0 = arith.constant 0 : i32
    return %arg0, %c0_i32 : i32, i32
  }
  func.func @transform_4(%arg0: i32) -> (i32, i32) {
    %c0_i32 = arith.constant 0 : i32
    %c0_i32_0 = arith.constant 0 : i32
    %c0_i32_1 = arith.constant 0 : i32
    return %c0_i32, %c0_i32_0 : i32, i32
  }
  func.func @transform_5(%arg0: i32) -> (i32, i32) {
    %c0_i32 = arith.constant 0 : i32
    %c0_i32_0 = arith.constant 0 : i32
    %c0_i32_1 = arith.constant 0 : i32
    return %c0_i32, %c0_i32_0 : i32, i32
  }
  func.func @transform_6(%arg0: i32) -> (i32, i32) {
    %c0_i32 = arith.constant 0 : i32
    %c0_i32_0 = arith.constant 0 : i32
    return %arg0, %c0_i32 : i32, i32
  }
  func.func @transform_7(%arg0: i32) -> (i32, i32) {
    %c0_i32 = arith.constant 0 : i32
    %c0_i32_0 = arith.constant 0 : i32
    return %arg0, %c0_i32 : i32, i32
  }
}

module attributes {stable_mosaic.version = 11 : i64} {
  func.func @_neck_fused_kernel(%arg0: i32, %arg1: memref<128x32xbf16, #tpu.memory_space<vmem>>, %arg2: memref<32x32xbf16, #tpu.memory_space<vmem>>, %arg3: memref<1x32xf32, #tpu.memory_space<vmem>>, %arg4: memref<64x32xbf16, #tpu.memory_space<vmem>>, %arg5: memref<32x4xbf16, #tpu.memory_space<vmem>>, %arg6: memref<1x4xf32, #tpu.memory_space<vmem>>, %arg7: memref<128x4xbf16, #tpu.memory_space<vmem>>) attributes {dimension_semantics = [#tpu.dimension_semantics<parallel>], iteration_bounds = array<i64: 1>, scalar_prefetch = 0 : i64, scratch_operands = 0 : i64, tpu.core_type = #tpu.core_type<tc>, window_params = [{transform_indices = @transform_0, window_bounds = array<i64: 128, 32>}, {pipeline_mode = #tpu.pipeline_mode<synchronous>, transform_indices = @transform_1, window_bounds = array<i64: 32, 32>}, {pipeline_mode = #tpu.pipeline_mode<synchronous>, transform_indices = @transform_2, window_bounds = array<i64: 1, 32>}, {transform_indices = @transform_3, window_bounds = array<i64: 64, 32>}, {pipeline_mode = #tpu.pipeline_mode<synchronous>, transform_indices = @transform_4, window_bounds = array<i64: 32, 4>}, {pipeline_mode = #tpu.pipeline_mode<synchronous>, transform_indices = @transform_5, window_bounds = array<i64: 1, 4>}, {transform_indices = @transform_6, window_bounds = array<i64: 128, 4>}]} {
    %c0 = arith.constant 0 : index
    %c0_0 = arith.constant 0 : index
    %0 = vector.load %arg1[%c0, %c0_0] : memref<128x32xbf16, #tpu.memory_space<vmem>>, vector<128x32xbf16>
    %c0_1 = arith.constant 0 : index
    %c0_2 = arith.constant 0 : index
    %1 = vector.load %arg2[%c0_1, %c0_2] : memref<32x32xbf16, #tpu.memory_space<vmem>>, vector<32x32xbf16>
    %cst = arith.constant dense<0.000000e+00> : vector<128x32xf32>
    %2 = tpu.matmul %0, %1, %cst {dimension_numbers = #tpu.dot_dimension_numbers<[1], [0], [0], [1], [0, 0, 1, 1], [], []>} : vector<128x32xbf16>, vector<32x32xbf16>, vector<128x32xf32> -> vector<128x32xf32>
    %c0_3 = arith.constant 0 : index
    %c0_4 = arith.constant 0 : index
    %3 = vector.load %arg3[%c0_3, %c0_4] : memref<1x32xf32, #tpu.memory_space<vmem>>, vector<1x32xf32>
    %4 = vector.broadcast %3 : vector<1x32xf32> to vector<128x32xf32>
    %5 = arith.addf %2, %4 : vector<128x32xf32>
    %c0_5 = arith.constant 0 : index
    %c0_6 = arith.constant 0 : index
    %6 = vector.load %arg4[%c0_5, %c0_6] : memref<64x32xbf16, #tpu.memory_space<vmem>>, vector<64x32xbf16>
    %7 = arith.extf %6 : vector<64x32xbf16> to vector<64x32xf32>
    %8 = vector.shape_cast %7 : vector<64x32xf32> to vector<8x1x8x32xf32>
    %9 = vector.shape_cast %8 : vector<8x1x8x32xf32> to vector<8x1x8x32xf32>
    %10 = vector.broadcast %9 : vector<8x1x8x32xf32> to vector<8x2x8x32xf32>
    %11 = vector.shape_cast %10 : vector<8x2x8x32xf32> to vector<128x32xf32>
    %12 = arith.addf %5, %11 : vector<128x32xf32>
    %13 = arith.truncf %12 : vector<128x32xf32> to vector<128x32xbf16>
    %c0_7 = arith.constant 0 : index
    %c0_8 = arith.constant 0 : index
    %14 = vector.load %arg5[%c0_7, %c0_8] : memref<32x4xbf16, #tpu.memory_space<vmem>>, vector<32x4xbf16>
    %cst_9 = arith.constant dense<0.000000e+00> : vector<128x4xf32>
    %15 = tpu.matmul %13, %14, %cst_9 {dimension_numbers = #tpu.dot_dimension_numbers<[1], [0], [0], [1], [0, 0, 1, 1], [], []>} : vector<128x32xbf16>, vector<32x4xbf16>, vector<128x4xf32> -> vector<128x4xf32>
    %c0_10 = arith.constant 0 : index
    %c0_11 = arith.constant 0 : index
    %16 = vector.load %arg6[%c0_10, %c0_11] : memref<1x4xf32, #tpu.memory_space<vmem>>, vector<1x4xf32>
    %17 = vector.broadcast %16 : vector<1x4xf32> to vector<128x4xf32>
    %18 = arith.addf %15, %17 : vector<128x4xf32>
    %19 = arith.truncf %18 : vector<128x4xf32> to vector<128x4xbf16>
    %c0_12 = arith.constant 0 : index
    %c0_13 = arith.constant 0 : index
    %20 = vector.load %arg7[%c0_12, %c0_13] : memref<128x4xbf16, #tpu.memory_space<vmem>>, vector<128x4xbf16>
    tpu.vector_store %arg7[%c0_12, %c0_13], %19 {strides = array<i32>} : memref<128x4xbf16, #tpu.memory_space<vmem>>, vector<128x4xbf16>,
    return
  }
  func.func @transform_0(%arg0: i32) -> (i32, i32) {
    %c0_i32 = arith.constant 0 : i32
    %c0_i32_0 = arith.constant 0 : i32
    return %arg0, %c0_i32 : i32, i32
  }
  func.func @transform_1(%arg0: i32) -> (i32, i32) {
    %c0_i32 = arith.constant 0 : i32
    %c0_i32_0 = arith.constant 0 : i32
    %c0_i32_1 = arith.constant 0 : i32
    return %c0_i32, %c0_i32_0 : i32, i32
  }
  func.func @transform_2(%arg0: i32) -> (i32, i32) {
    %c0_i32 = arith.constant 0 : i32
    %c0_i32_0 = arith.constant 0 : i32
    %c0_i32_1 = arith.constant 0 : i32
    return %c0_i32, %c0_i32_0 : i32, i32
  }
  func.func @transform_3(%arg0: i32) -> (i32, i32) {
    %c0_i32 = arith.constant 0 : i32
    %c0_i32_0 = arith.constant 0 : i32
    return %arg0, %c0_i32 : i32, i32
  }
  func.func @transform_4(%arg0: i32) -> (i32, i32) {
    %c0_i32 = arith.constant 0 : i32
    %c0_i32_0 = arith.constant 0 : i32
    %c0_i32_1 = arith.constant 0 : i32
    return %c0_i32, %c0_i32_0 : i32, i32
  }
  func.func @transform_5(%arg0: i32) -> (i32, i32) {
    %c0_i32 = arith.constant 0 : i32
    %c0_i32_0 = arith.constant 0 : i32
    %c0_i32_1 = arith.constant 0 : i32
    return %c0_i32, %c0_i32_0 : i32, i32
  }
  func.func @transform_6(%arg0: i32) -> (i32, i32) {
    %c0_i32 = arith.constant 0 : i32
    %c0_i32_0 = arith.constant 0 : i32
    return %arg0, %c0_i32 : i32, i32
  }
}

</mosaic_0001>

<llo_original>
// kernel: sam_video_frame_encoder_forward.9
$region0: #{sam_video_frame_encoder_forward.9}
  #allocation0 [shape = 'u32[]', space=smem, size = 0x4, offset = 0x4, fixed_abs, tag = 'smem constant byte address 0x4 - core index']
  #allocation1 [shape = 'u32[144,128]{1,0:T(1,128)}', space=vmem, size = 0x12000, scoped, tag = 'internal scratch']
  %s0 = inlined_call_operand.vmem [shape: bf16[8,128], index: 0, kind: input, shape index: {}]
  %s1 = inlined_call_operand.vmem [shape: bf16[128,32], index: 1, kind: input, shape index: {}]
  %s2 = inlined_call_operand.vmem [shape: f32[1,32], index: 2, kind: input, shape index: {}]
  %s3 = inlined_call_operand.vmem [shape: bf16[8,32], index: 3, kind: output, shape index: {}]
  %s4 = sld [smem:[#allocation0]]
  $region22: #{sam_video_frame_encoder_forward.9} parent=0
    _
  %s6 = ssub.s32 1, %s4
  %s7 = scalar_select 0, %s6, %s4
  // Predicated region
  $region2: #{sam_video_frame_encoder_forward.9} parent=0 // pred_check
    _
  $region3: #{sam_video_frame_encoder_forward.9} parent=0 // pred_check_branch
    %9 = sbr.rel (0) target = $region5
  $region4: #{sam_video_frame_encoder_forward.9} parent=0 // pred_region
    _
  $region5: #{sam_video_frame_encoder_forward.9} parent=0 // pred_fallthru
    _
  // Predicated region
  $region6: #{sam_video_frame_encoder_forward.9} parent=0 // pred_check
    _
  $region7: #{sam_video_frame_encoder_forward.9} parent=0 // pred_check_branch
    %11 = sbr.rel (0) target = $region9
  $region8: #{sam_video_frame_encoder_forward.9} parent=0 // pred_region
    _
  $region9: #{sam_video_frame_encoder_forward.9} parent=0 // pred_fallthru
    _
  // Predicated region
  $region10: #{sam_video_frame_encoder_forward.9} parent=0 // pred_check
    _
  $region11: #{sam_video_frame_encoder_forward.9} parent=0 // pred_check_branch
    %13 = sbr.rel (0) target = $region13
  $region12: #{sam_video_frame_encoder_forward.9} parent=0 // pred_region
    _
  $region13: #{sam_video_frame_encoder_forward.9} parent=0 // pred_fallthru
    _
  %v15 = vld [vmem:[%s0] sm:$0xf]
  %v16 = vld [vmem:[%s1] sm:$0xf]
  %v17 = vld [vmem:[%s1 + $0x4] sm:$0xf]
  %v18 = vld [vmem:[%s1 + $0x8] sm:$0xf]
  %v19 = vld [vmem:[%s1 + $0xc] sm:$0xf]
  %v20 = vld [vmem:[%s1 + $0x10] sm:$0xf]
  %v21 = vld [vmem:[%s1 + $0x14] sm:$0xf]
  %v22 = vld [vmem:[%s1 + $0x18] sm:$0xf]
  %v23 = vld [vmem:[%s1 + $0x1c] sm:$0xf]
  %v24 = vld [vmem:[%s1 + $0x20] sm:$0xf]
  %v25 = vld [vmem:[%s1 + $0x24] sm:$0xf]
  %v26 = vld [vmem:[%s1 + $0x28] sm:$0xf]
  %v27 = vld [vmem:[%s1 + $0x2c] sm:$0xf]
  %v28 = vld [vmem:[%s1 + $0x30] sm:$0xf]
  %v29 = vld [vmem:[%s1 + $0x34] sm:$0xf]
  %v30 = vld [vmem:[%s1 + $0x38] sm:$0xf]
  %v31 = vld [vmem:[%s1 + $0x3c] sm:$0xf]
  %v32 = vld [vmem:[%s2] sm:$0x1]
  %v34 = vlaneseq
  %v35 = vshrl.u32 %v34, 7
  %v36 = vsub.s32 0, %v35
  %v37 = vrot.slane %v32, %v36
  %v55 = vunpack.c.l.b16 %v16
  %v56 = vunpack.c.l.b16 %v17
  %v57 = vunpack.c.l.b16 %v18
  %v58 = vunpack.c.l.b16 %v19
  %v59 = vunpack.c.l.b16 %v20
  %v60 = vunpack.c.l.b16 %v21
  %v61 = vunpack.c.l.b16 %v22
  %v62 = vunpack.c.l.b16 %v23
  %v63 = vunpack.c.l.b16 %v24
  %v64 = vunpack.c.l.b16 %v25
  %v65 = vunpack.c.l.b16 %v26
  %v66 = vunpack.c.l.b16 %v27
  %v67 = vunpack.c.l.b16 %v28
  %v68 = vunpack.c.l.b16 %v29
  %v69 = vunpack.c.l.b16 %v30
  %v70 = vunpack.c.l.b16 %v31
  %v71 = vpack.c.b16 %v56, %v55
  %v72 = vpack.c.b16 %v58, %v57
  %v73 = vpack.c.b16 %v60, %v59
  %v74 = vpack.c.b16 %v62, %v61
  %v75 = vpack.c.b16 %v64, %v63
  %v76 = vpack.c.b16 %v66, %v65
  %v77 = vpack.c.b16 %v68, %v67
  %v78 = vpack.c.b16 %v70, %v69
  %87 = vmatprep.subr.bf16.mxu0 0
  %88 = vmatpush1.bf16.msra.mxu0 %v71
  %89 = vmatprep.subr.bf16.mxu0 0
  %90 = vmatpush1.bf16.msra.mxu0 %v72
  %91 = vmatprep.subr.bf16.mxu0 0
  %92 = vmatpush1.bf16.msra.mxu0 %v73
  %93 = vmatprep.subr.bf16.mxu0 0
  %94 = vmatpush1.bf16.msra.mxu0 %v74
  %95 = vmatprep.subr.bf16.mxu0 0
  %96 = vmatpush1.bf16.msra.mxu0 %v75
  %97 = vmatprep.subr.bf16.mxu0 0
  %98 = vmatpush1.bf16.msra.mxu0 %v76
  %99 = vmatprep.subr.bf16.mxu0 0
  %100 = vmatpush1.bf16.msra.mxu0 %v77
  %101 = vmatprep.subr.bf16.mxu0 0
  %102 = vmatpush1.bf16.msra.mxu0 %v78
  %103 = vmatprep.subr.bf16.mxu0 0
  %104 = vmatpush1.bf16.msra.mxu0 0
  %105 = vmatprep.subr.bf16.mxu0 0
  %106 = vmatpush1.bf16.msra.mxu0 0
  %107 = vmatprep.subr.bf16.mxu0 0
  %108 = vmatpush1.bf16.msra.mxu0 0
  %109 = vmatprep.subr.bf16.mxu0 0
  %110 = vmatpush1.bf16.msra.mxu0 0
  %111 = vmatprep.subr.bf16.mxu0 0
  %112 = vmatpush1.bf16.msra.mxu0 0
  %113 = vmatprep.subr.bf16.mxu0 0
  %114 = vmatpush1.bf16.msra.mxu0 0
  %115 = vmatprep.subr.bf16.mxu0 0
  %116 = vmatpush1.bf16.msra.mxu0 0
  %117 = vmatprep.subr.bf16.mxu0 0
  %118 = vmatpush1.bf16.msra.mxu0 0
  %119 = vmatprep.mubr.bf16.mxu0 0
  %120 = vmatmul.mubr.bf16.gmra.mrb[0].mxu0 %v15
  %v121 = vpop.f32.mrb[0].mxu0
  %v122 = vadd.f32 %v37, %v121
  %v123 = vpop.f32.mrb[0].mxu0
  %v124 = vpop.f32.mrb[0].mxu0
  %v125 = vpop.f32.mrb[0].mxu0
  %126 = vdwg.mxu0
  %v127 = vpack.c.bf16 %v122, %v122
  %vm128 = vcmask 257024
  %129 = vst.msk [vmem:[%s3] sm:$0xf] %vm128, %v127
  // Predicated region
  $region14: #{sam_video_frame_encoder_forward.9} parent=0 // pred_check
    _
  $region15: #{sam_video_frame_encoder_forward.9} parent=0 // pred_check_branch
    %131 = sbr.rel (0) target = $region17
  $region16: #{sam_video_frame_encoder_forward.9} parent=0 // pred_region
    _
  $region17: #{sam_video_frame_encoder_forward.9} parent=0 // pred_fallthru
    _
  // Predicated region
  $region18: #{sam_video_frame_encoder_forward.9} parent=0 // pred_check
    _
  $region19: #{sam_video_frame_encoder_forward.9} parent=0 // pred_check_branch
    %133 = sbr.rel (0) target = $region21
  $region20: #{sam_video_frame_encoder_forward.9} parent=0 // pred_region
    _
  $region21: #{sam_video_frame_encoder_forward.9} parent=0 // pred_fallthru
    _

// kernel: sam_video_frame_encoder_forward.6
$region0: #{sam_video_frame_encoder_forward.6}
  #allocation0 [shape = 'u32[]', space=smem, size = 0x4, offset = 0x4, fixed_abs, tag = 'smem constant byte address 0x4 - core index']
  #allocation1 [shape = 'u32[144,128]{1,0:T(1,128)}', space=vmem, size = 0x12000, scoped, tag = 'internal scratch']
  %s0 = inlined_call_operand.vmem [shape: bf16[128,48], index: 0, kind: input, shape index: {}]
  %s1 = inlined_call_operand.vmem [shape: bf16[48,32], index: 1, kind: input, shape index: {}]
  %s2 = inlined_call_operand.vmem [shape: f32[1,32], index: 2, kind: input, shape index: {}]
  %s3 = inlined_call_operand.vmem [shape: bf16[128,32], index: 3, kind: output, shape index: {}]
  %s4 = sld [smem:[#allocation0]]
  $region22: #{sam_video_frame_encoder_forward.6} parent=0
    _
  %s6 = ssub.s32 1, %s4
  %s7 = scalar_select 0, %s6, %s4
  // Predicated region
  $region2: #{sam_video_frame_encoder_forward.6} parent=0 // pred_check
    _
  $region3: #{sam_video_frame_encoder_forward.6} parent=0 // pred_check_branch
    %9 = sbr.rel (0) target = $region5
  $region4: #{sam_video_frame_encoder_forward.6} parent=0 // pred_region
    _
  $region5: #{sam_video_frame_encoder_forward.6} parent=0 // pred_fallthru
    _
  // Predicated region
  $region6: #{sam_video_frame_encoder_forward.6} parent=0 // pred_check
    _
  $region7: #{sam_video_frame_encoder_forward.6} parent=0 // pred_check_branch
    %11 = sbr.rel (0) target = $region9
  $region8: #{sam_video_frame_encoder_forward.6} parent=0 // pred_region
    _
  $region9: #{sam_video_frame_encoder_forward.6} parent=0 // pred_fallthru
    _
  // Predicated region
  $region10: #{sam_video_frame_encoder_forward.6} parent=0 // pred_check
    _
  $region11: #{sam_video_frame_encoder_forward.6} parent=0 // pred_check_branch
    %13 = sbr.rel (0) target = $region13
  $region12: #{sam_video_frame_encoder_forward.6} parent=0 // pred_region
    _
  $region13: #{sam_video_frame_encoder_forward.6} parent=0 // pred_fallthru
    _
  %v15 = vld [vmem:[%s0] sm:$0xf]
  %v16 = vld [vmem:[%s0 + $0x4] sm:$0xf]
  %v17 = vld [vmem:[%s0 + $0x8] sm:$0xf]
  %v18 = vld [vmem:[%s0 + $0xc] sm:$0xf]
  %v19 = vld [vmem:[%s0 + $0x10] sm:$0xf]
  %v20 = vld [vmem:[%s0 + $0x14] sm:$0xf]
  %v21 = vld [vmem:[%s0 + $0x18] sm:$0xf]
  %v22 = vld [vmem:[%s0 + $0x1c] sm:$0xf]
  %v23 = vld [vmem:[%s0 + $0x20] sm:$0xf]
  %v24 = vld [vmem:[%s0 + $0x24] sm:$0xf]
  %v25 = vld [vmem:[%s0 + $0x28] sm:$0xf]
  %v26 = vld [vmem:[%s0 + $0x2c] sm:$0xf]
  %v27 = vld [vmem:[%s0 + $0x30] sm:$0xf]
  %v28 = vld [vmem:[%s0 + $0x34] sm:$0xf]
  %v29 = vld [vmem:[%s0 + $0x38] sm:$0xf]
  %v30 = vld [vmem:[%s0 + $0x3c] sm:$0xf]
  %v31 = vld [vmem:[%s1] sm:$0xf]
  %v32 = vld [vmem:[%s1 + $0x4] sm:$0xf]
  %v33 = vld [vmem:[%s1 + $0x8] sm:$0xf]
  %v34 = vld [vmem:[%s1 + $0xc] sm:$0xf]
  %v35 = vld [vmem:[%s1 + $0x10] sm:$0xf]
  %v36 = vld [vmem:[%s1 + $0x14] sm:$0xf]
  %v37 = vld [vmem:[%s2] sm:$0x1]
  %v39 = vlaneseq
  %v40 = vshrl.u32 %v39, 7
  %v41 = vsub.s32 0, %v40
  %v42 = vrot.slane %v37, %v41
  %v60 = vunpack.c.l.b16 %v15
  %v61 = vunpack.c.l.b16 %v16
  %v62 = vunpack.c.l.b16 %v17
  %v63 = vunpack.c.l.b16 %v18
  %v64 = vunpack.c.l.b16 %v19
  %v65 = vunpack.c.l.b16 %v20
  %v66 = vunpack.c.l.b16 %v21
  %v67 = vunpack.c.l.b16 %v22
  %v68 = vunpack.c.l.b16 %v23
  %v69 = vunpack.c.l.b16 %v24
  %v70 = vunpack.c.l.b16 %v25
  %v71 = vunpack.c.l.b16 %v26
  %v72 = vunpack.c.l.b16 %v27
  %v73 = vunpack.c.l.b16 %v28
  %v74 = vunpack.c.l.b16 %v29
  %v75 = vunpack.c.l.b16 %v30
  %v76 = vpack.c.b16 %v61, %v60
  %v77 = vpack.c.b16 %v63, %v62
  %v78 = vpack.c.b16 %v65, %v64
  %v79 = vpack.c.b16 %v67, %v66
  %v80 = vpack.c.b16 %v69, %v68
  %v81 = vpack.c.b16 %v71, %v70
  %v82 = vpack.c.b16 %v73, %v72
  %v83 = vpack.c.b16 %v75, %v74
  %v90 = vunpack.c.l.b16 %v31
  %v91 = vunpack.c.l.b16 %v32
  %v92 = vunpack.c.l.b16 %v33
  %v93 = vunpack.c.l.b16 %v34
  %v94 = vunpack.c.l.b16 %v35
  %v95 = vunpack.c.l.b16 %v36
  %v96 = vpack.c.b16 %v91, %v90
  %v97 = vpack.c.b16 %v93, %v92
  %v98 = vpack.c.b16 %v95, %v94
  %vm102 = vcmask 392192
  %v104 = vsel %vm102, %v76, 0
  %v107 = vsel %vm102, %v77, 0
  %v110 = vsel %vm102, %v78, 0
  %v113 = vsel %vm102, %v79, 0
  %v116 = vsel %vm102, %v80, 0
  %v119 = vsel %vm102, %v81, 0
  %v122 = vsel %vm102, %v82, 0
  %v125 = vsel %vm102, %v83, 0
  %127 = vmatprep.subr.bf16.mxu0 0
  %128 = vmatpush1.bf16.msra.mxu0 %v96
  %129 = vmatprep.subr.bf16.mxu0 0
  %130 = vmatpush1.bf16.msra.mxu0 %v97
  %131 = vmatprep.subr.bf16.mxu0 0
  %132 = vmatpush1.bf16.msra.mxu0 %v98
  %133 = vmatprep.subr.bf16.mxu0 0
  %134 = vmatpush1.bf16.msra.mxu0 0
  %135 = vmatprep.subr.bf16.mxu0 0
  %136 = vmatpush1.bf16.msra.mxu0 0
  %137 = vmatprep.subr.bf16.mxu0 0
  %138 = vmatpush1.bf16.msra.mxu0 0
  %139 = vmatprep.subr.bf16.mxu0 0
  %140 = vmatpush1.bf16.msra.mxu0 0
  %141 = vmatprep.subr.bf16.mxu0 0
  %142 = vmatpush1.bf16.msra.mxu0 0
  %143 = vmatprep.subr.bf16.mxu0 0
  %144 = vmatpush1.bf16.msra.mxu0 0
  %145 = vmatprep.subr.bf16.mxu0 0
  %146 = vmatpush1.bf16.msra.mxu0 0
  %147 = vmatprep.subr.bf16.mxu0 0
  %148 = vmatpush1.bf16.msra.mxu0 0
  %149 = vmatprep.subr.bf16.mxu0 0
  %150 = vmatpush1.bf16.msra.mxu0 0
  %151 = vmatprep.subr.bf16.mxu0 0
  %152 = vmatpush1.bf16.msra.mxu0 0
  %153 = vmatprep.subr.bf16.mxu0 0
  %154 = vmatpush1.bf16.msra.mxu0 0
  %155 = vmatprep.subr.bf16.mxu0 0
  %156 = vmatpush1.bf16.msra.mxu0 0
  %157 = vmatprep.subr.bf16.mxu0 0
  %158 = vmatpush1.bf16.msra.mxu0 0
  %159 = vmatprep.mubr.bf16.mxu0 0
  %160 = vmatmul.mubr.bf16.gmra.mrb[0].mxu0 %v104
  %v161 = vpop.f32.mrb[0].mxu0
  %v162 = vadd.f32 %v42, %v161
  %v163 = vpop.f32.mrb[0].mxu0
  %v164 = vpop.f32.mrb[0].mxu0
  %v165 = vadd.f32 %v42, %v164
  %v166 = vpop.f32.mrb[0].mxu0
  %167 = vmatprep.mubr.bf16.mxu0 0
  %168 = vmatmul.mubr.bf16.gmra.mrb[0].mxu0 %v107
  %v169 = vpop.f32.mrb[0].mxu0
  %v170 = vadd.f32 %v42, %v169
  %v171 = vpop.f32.mrb[0].mxu0
  %v172 = vpop.f32.mrb[0].mxu0
  %v173 = vadd.f32 %v42, %v172
  %v174 = vpop.f32.mrb[0].mxu0
  %175 = vmatprep.mubr.bf16.mxu0 0
  %176 = vmatmul.mubr.bf16.gmra.mrb[0].mxu0 %v110
  %v177 = vpop.f32.mrb[0].mxu0
  %v178 = vadd.f32 %v42, %v177
  %v179 = vpop.f32.mrb[0].mxu0
  %v180 = vpop.f32.mrb[0].mxu0
  %v181 = vadd.f32 %v42, %v180
  %v182 = vpop.f32.mrb[0].mxu0
  %183 = vmatprep.mubr.bf16.mxu0 0
  %184 = vmatmul.mubr.bf16.gmra.mrb[0].mxu0 %v113
  %v185 = vpop.f32.mrb[0].mxu0
  %v186 = vadd.f32 %v42, %v185
  %v187 = vpop.f32.mrb[0].mxu0
  %v188 = vpop.f32.mrb[0].mxu0
  %v189 = vadd.f32 %v42, %v188
  %v190 = vpop.f32.mrb[0].mxu0
  %191 = vmatprep.mubr.bf16.mxu0 0
  %192 = vmatmul.mubr.bf16.gmra.mrb[0].mxu0 %v116
  %v193 = vpop.f32.mrb[0].mxu0
  %v194 = vadd.f32 %v42, %v193
  %v195 = vpop.f32.mrb[0].mxu0
  %v196 = vpop.f32.mrb[0].mxu0
  %v197 = vadd.f32 %v42, %v196
  %v198 = vpop.f32.mrb[0].mxu0
  %199 = vmatprep.mubr.bf16.mxu0 0
  %200 = vmatmul.mubr.bf16.gmra.mrb[0].mxu0 %v119
  %v201 = vpop.f32.mrb[0].mxu0
  %v202 = vadd.f32 %v42, %v201
  %v203 = vpop.f32.mrb[0].mxu0
  %v204 = vpop.f32.mrb[0].mxu0
  %v205 = vadd.f32 %v42, %v204
  %v206 = vpop.f32.mrb[0].mxu0
  %207 = vmatprep.mubr.bf16.mxu0 0
  %208 = vmatmul.mubr.bf16.gmra.mrb[0].mxu0 %v122
  %v209 = vpop.f32.mrb[0].mxu0
  %v210 = vadd.f32 %v42, %v209
  %v211 = vpop.f32.mrb[0].mxu0
  %v212 = vpop.f32.mrb[0].mxu0
  %v213 = vadd.f32 %v42, %v212
  %v214 = vpop.f32.mrb[0].mxu0
  %215 = vmatprep.mubr.bf16.mxu0 0
  %216 = vmatmul.mubr.bf16.gmra.mrb[0].mxu0 %v125
  %v217 = vpop.f32.mrb[0].mxu0
  %v218 = vadd.f32 %v42, %v217
  %v219 = vpop.f32.mrb[0].mxu0
  %v220 = vpop.f32.mrb[0].mxu0
  %v221 = vadd.f32 %v42, %v220
  %v222 = vpop.f32.mrb[0].mxu0
  %223 = vdwg.mxu0
  %v224 = vpack.c.bf16 %v165, %v162
  %v225 = vpack.c.bf16 %v173, %v170
  %v226 = vpack.c.bf16 %v181, %v178
  %v227 = vpack.c.bf16 %v189, %v186
  %v228 = vpack.c.bf16 %v197, %v194
  %v229 = vpack.c.bf16 %v205, %v202
  %v230 = vpack.c.bf16 %v213, %v210
  %v231 = vpack.c.bf16 %v221, %v218
  %v240 = vunpack.c.l.b16 %v224
  %v241 = vunpack.c.h.b16 %v224
  %v242 = vunpack.c.l.b16 %v225
  %v243 = vunpack.c.h.b16 %v225
  %v244 = vunpack.c.l.b16 %v226
  %v245 = vunpack.c.h.b16 %v226
  %v246 = vunpack.c.l.b16 %v227
  %v247 = vunpack.c.h.b16 %v227
  %v248 = vunpack.c.l.b16 %v228
  %v249 = vunpack.c.h.b16 %v228
  %v250 = vunpack.c.l.b16 %v229
  %v251 = vunpack.c.h.b16 %v229
  %v252 = vunpack.c.l.b16 %v230
  %v253 = vunpack.c.h.b16 %v230
  %v254 = vunpack.c.l.b16 %v231
  %v255 = vunpack.c.h.b16 %v231
  %v256 = vpack.c.b16 %v240, %v240
  %v257 = vpack.c.b16 %v241, %v241
  %v258 = vpack.c.b16 %v242, %v242
  %v259 = vpack.c.b16 %v243, %v243
  %v260 = vpack.c.b16 %v244, %v244
  %v261 = vpack.c.b16 %v245, %v245
  %v262 = vpack.c.b16 %v246, %v246
  %v263 = vpack.c.b16 %v247, %v247
  %v264 = vpack.c.b16 %v248, %v248
  %v265 = vpack.c.b16 %v249, %v249
  %v266 = vpack.c.b16 %v250, %v250
  %v267 = vpack.c.b16 %v251, %v251
  %v268 = vpack.c.b16 %v252, %v252
  %v269 = vpack.c.b16 %v253, %v253
  %v270 = vpack.c.b16 %v254, %v254
  %v271 = vpack.c.b16 %v255, %v255
  %vm288 = vcmask 257024
  %289 = vst.msk [vmem:[%s3] sm:$0xf] %vm288, %v256
  %290 = vst.msk [vmem:[%s3 + $0x4] sm:$0xf] %vm288, %v257
  %291 = vst.msk [vmem:[%s3 + $0x8] sm:$0xf] %vm288, %v258
  %292 = vst.msk [vmem:[%s3 + $0xc] sm:$0xf] %vm288, %v259
  %293 = vst.msk [vmem:[%s3 + $0x10] sm:$0xf] %vm288, %v260
  %294 = vst.msk [vmem:[%s3 + $0x14] sm:$0xf] %vm288, %v261
  %295 = vst.msk [vmem:[%s3 + $0x18] sm:$0xf] %vm288, %v262
  %296 = vst.msk [vmem:[%s3 + $0x1c] sm:$0xf] %vm288, %v263
  %297 = vst.msk [vmem:[%s3 + $0x20] sm:$0xf] %vm288, %v264
  %298 = vst.msk [vmem:[%s3 + $0x24] sm:$0xf] %vm288, %v265
  %299 = vst.msk [vmem:[%s3 + $0x28] sm:$0xf] %vm288, %v266
  %300 = vst.msk [vmem:[%s3 + $0x2c] sm:$0xf] %vm288, %v267
  %301 = vst.msk [vmem:[%s3 + $0x30] sm:$0xf] %vm288, %v268
  %302 = vst.msk [vmem:[%s3 + $0x34] sm:$0xf] %vm288, %v269
  %303 = vst.msk [vmem:[%s3 + $0x38] sm:$0xf] %vm288, %v270
  %304 = vst.msk [vmem:[%s3 + $0x3c] sm:$0xf] %vm288, %v271
  // Predicated region
  $region14: #{sam_video_frame_encoder_forward.6} parent=0 // pred_check
    _
  $region15: #{sam_video_frame_encoder_forward.6} parent=0 // pred_check_branch
    %306 = sbr.rel (0) target = $region17
  $region16: #{sam_video_frame_encoder_forward.6} parent=0 // pred_region
    _
  $region17: #{sam_video_frame_encoder_forward.6} parent=0 // pred_fallthru
    _
  // Predicated region
  $region18: #{sam_video_frame_encoder_forward.6} parent=0 // pred_check
    _
  $region19: #{sam_video_frame_encoder_forward.6} parent=0 // pred_check_branch
    %308 = sbr.rel (0) target = $region21
  $region20: #{sam_video_frame_encoder_forward.6} parent=0 // pred_region
    _
  $region21: #{sam_video_frame_encoder_forward.6} parent=0 // pred_fallthru
    _

// kernel: sam_video_frame_encoder_forward.8
$region0: #{sam_video_frame_encoder_forward.8}
  #allocation0 [shape = 'u32[]', space=smem, size = 0x4, offset = 0x4, fixed_abs, tag = 'smem constant byte address 0x4 - core index']
  #allocation1 [shape = 'u32[144,128]{1,0:T(1,128)}', space=vmem, size = 0x12000, scoped, tag = 'internal scratch']
  %s0 = inlined_call_operand.vmem [shape: bf16[4,2,2,128], index: 0, kind: input, shape index: {}]
  %s1 = inlined_call_operand.vmem [shape: bf16[2,128,128], index: 1, kind: input, shape index: {}]
  %s2 = inlined_call_operand.vmem [shape: f32[1,128], index: 2, kind: input, shape index: {}]
  %s3 = inlined_call_operand.vmem [shape: bf16[4,2,128], index: 3, kind: output, shape index: {}]
  %s4 = sld [smem:[#allocation0]]
  $region22: #{sam_video_frame_encoder_forward.8} parent=0
    _
  %s6 = ssub.s32 1, %s4
  %s7 = scalar_select 0, %s6, %s4
  // Predicated region
  $region2: #{sam_video_frame_encoder_forward.8} parent=0 // pred_check
    _
  $region3: #{sam_video_frame_encoder_forward.8} parent=0 // pred_check_branch
    %9 = sbr.rel (0) target = $region5
  $region4: #{sam_video_frame_encoder_forward.8} parent=0 // pred_region
    _
  $region5: #{sam_video_frame_encoder_forward.8} parent=0 // pred_fallthru
    _
  // Predicated region
  $region6: #{sam_video_frame_encoder_forward.8} parent=0 // pred_check
    _
  $region7: #{sam_video_frame_encoder_forward.8} parent=0 // pred_check_branch
    %11 = sbr.rel (0) target = $region9
  $region8: #{sam_video_frame_encoder_forward.8} parent=0 // pred_region
    _
  $region9: #{sam_video_frame_encoder_forward.8} parent=0 // pred_fallthru
    _
  // Predicated region
  $region10: #{sam_video_frame_encoder_forward.8} parent=0 // pred_check
    _
  $region11: #{sam_video_frame_encoder_forward.8} parent=0 // pred_check_branch
    %13 = sbr.rel (0) target = $region13
  $region12: #{sam_video_frame_encoder_forward.8} parent=0 // pred_region
    _
  $region13: #{sam_video_frame_encoder_forward.8} parent=0 // pred_fallthru
    _
  %v15 = vld [vmem:[%s0] sm:$0x1]
  %v16 = vld [vmem:[%s0 + $0x2] sm:$0x1]
  %v17 = vld [vmem:[%s0 + $0x4] sm:$0x1]
  %v18 = vld [vmem:[%s0 + $0x6] sm:$0x1]
  %v19 = vld [vmem:[%s1] sm:$0xf]
  %v20 = vld [vmem:[%s1 + $0x4] sm:$0xf]
  %v21 = vld [vmem:[%s1 + $0x8] sm:$0xf]
  %v22 = vld [vmem:[%s1 + $0xc] sm:$0xf]
  %v23 = vld [vmem:[%s1 + $0x10] sm:$0xf]
  %v24 = vld [vmem:[%s1 + $0x14] sm:$0xf]
  %v25 = vld [vmem:[%s1 + $0x18] sm:$0xf]
  %v26 = vld [vmem:[%s1 + $0x1c] sm:$0xf]
  %v27 = vld [vmem:[%s1 + $0x20] sm:$0xf]
  %v28 = vld [vmem:[%s1 + $0x24] sm:$0xf]
  %v29 = vld [vmem:[%s1 + $0x28] sm:$0xf]
  %v30 = vld [vmem:[%s1 + $0x2c] sm:$0xf]
  %v31 = vld [vmem:[%s1 + $0x30] sm:$0xf]
  %v32 = vld [vmem:[%s1 + $0x34] sm:$0xf]
  %v33 = vld [vmem:[%s1 + $0x38] sm:$0xf]
  %v34 = vld [vmem:[%s1 + $0x3c] sm:$0xf]
  %s35 = scalar_lea.vmem %s0, 1
  %v36 = vld [vmem:[%s35] sm:$0x1]
  %v37 = vld [vmem:[%s35 + $0x2] sm:$0x1]
  %v38 = vld [vmem:[%s35 + $0x4] sm:$0x1]
  %v39 = vld [vmem:[%s35 + $0x6] sm:$0x1]
  %s40 = scalar_lea.vmem %s1, 64
  %v41 = vld [vmem:[%s40] sm:$0xf]
  %v42 = vld [vmem:[%s40 + $0x4] sm:$0xf]
  %v43 = vld [vmem:[%s40 + $0x8] sm:$0xf]
  %v44 = vld [vmem:[%s40 + $0xc] sm:$0xf]
  %v45 = vld [vmem:[%s40 + $0x10] sm:$0xf]
  %v46 = vld [vmem:[%s40 + $0x14] sm:$0xf]
  %v47 = vld [vmem:[%s40 + $0x18] sm:$0xf]
  %v48 = vld [vmem:[%s40 + $0x1c] sm:$0xf]
  %v49 = vld [vmem:[%s40 + $0x20] sm:$0xf]
  %v50 = vld [vmem:[%s40 + $0x24] sm:$0xf]
  %v51 = vld [vmem:[%s40 + $0x28] sm:$0xf]
  %v52 = vld [vmem:[%s40 + $0x2c] sm:$0xf]
  %v53 = vld [vmem:[%s40 + $0x30] sm:$0xf]
  %v54 = vld [vmem:[%s40 + $0x34] sm:$0xf]
  %v55 = vld [vmem:[%s40 + $0x38] sm:$0xf]
  %v56 = vld [vmem:[%s40 + $0x3c] sm:$0xf]
  %v61 = vcombine.low %v36, %v37
  %v62 = vcombine.low %v38, %v39
  %v64 = vunpack.c.l.s4 1966171168
  %v65 = vunpack.c.0.s8 %v64
  %v66 = vlaneseq
  %v67 = vshrl.u32 %v66, 7
  %v68 = vsub.s32 %v65, %v67
  %v69 = vrot.slane %v61, %v68
  %v71 = vunpack.c.l.s4 1966171168
  %v72 = vunpack.c.0.s8 %v71
  %v73 = vlaneseq
  %v74 = vshrl.u32 %v73, 7
  %v75 = vsub.s32 %v72, %v74
  %v76 = vrot.slane %v62, %v75
  %v77 = vcombine.low %v69, %v76
  %v79 = vunpack.c.l.s4 1966171168
  %v80 = vunpack.c.0.s8 %v79
  %v81 = vlaneseq
  %v82 = vshrl.u32 %v81, 7
  %v83 = vsub.s32 %v80, %v82
  %v84 = vrot.slane %v77, %v83
  %v102 = vunpack.c.l.b16 %v41
  %v103 = vunpack.c.l.b16 %v42
  %v104 = vunpack.c.l.b16 %v43
  %v105 = vunpack.c.l.b16 %v44
  %v106 = vunpack.c.l.b16 %v45
  %v107 = vunpack.c.l.b16 %v46
  %v108 = vunpack.c.l.b16 %v47
  %v109 = vunpack.c.l.b16 %v48
  %v110 = vunpack.c.l.b16 %v49
  %v111 = vunpack.c.l.b16 %v50
  %v112 = vunpack.c.l.b16 %v51
  %v113 = vunpack.c.l.b16 %v52
  %v114 = vunpack.c.l.b16 %v53
  %v115 = vunpack.c.l.b16 %v54
  %v116 = vunpack.c.l.b16 %v55
  %v117 = vunpack.c.l.b16 %v56
  %v118 = vpack.c.b16 %v103, %v102
  %v119 = vpack.c.b16 %v105, %v104
  %v120 = vpack.c.b16 %v107, %v106
  %v121 = vpack.c.b16 %v109, %v108
  %v122 = vpack.c.b16 %v111, %v110
  %v123 = vpack.c.b16 %v113, %v112
  %v124 = vpack.c.b16 %v115, %v114
  %v125 = vpack.c.b16 %v117, %v116
  %134 = vmatprep.subr.bf16.mxu0 0
  %135 = vmatpush1.bf16.msra.mxu0 %v118
  %136 = vmatprep.subr.bf16.mxu0 0
  %137 = vmatpush1.bf16.msra.mxu0 %v119
  %138 = vmatprep.subr.bf16.mxu0 0
  %139 = vmatpush1.bf16.msra.mxu0 %v120
  %140 = vmatprep.subr.bf16.mxu0 0
  %141 = vmatpush1.bf16.msra.mxu0 %v121
  %142 = vmatprep.subr.bf16.mxu0 0
  %143 = vmatpush1.bf16.msra.mxu0 %v122
  %144 = vmatprep.subr.bf16.mxu0 0
  %145 = vmatpush1.bf16.msra.mxu0 %v123
  %146 = vmatprep.subr.bf16.mxu0 0
  %147 = vmatpush1.bf16.msra.mxu0 %v124
  %148 = vmatprep.subr.bf16.mxu0 0
  %149 = vmatpush1.bf16.msra.mxu0 %v125
  %150 = vmatprep.subr.bf16.mxu0 0
  %151 = vmatpush1.bf16.msra.mxu0 0
  %152 = vmatprep.subr.bf16.mxu0 0
  %153 = vmatpush1.bf16.msra.mxu0 0
  %154 = vmatprep.subr.bf16.mxu0 0
  %155 = vmatpush1.bf16.msra.mxu0 0
  %156 = vmatprep.subr.bf16.mxu0 0
  %157 = vmatpush1.bf16.msra.mxu0 0
  %158 = vmatprep.subr.bf16.mxu0 0
  %159 = vmatpush1.bf16.msra.mxu0 0
  %160 = vmatprep.subr.bf16.mxu0 0
  %161 = vmatpush1.bf16.msra.mxu0 0
  %162 = vmatprep.subr.bf16.mxu0 0
  %163 = vmatpush1.bf16.msra.mxu0 0
  %164 = vmatprep.subr.bf16.mxu0 0
  %165 = vmatpush1.bf16.msra.mxu0 0
  %166 = vmatprep.mubr.bf16.mxu0 0
  %167 = vmatmul.mubr.bf16.gmra.mrb[0].mxu0 %v84
  %v168 = vpop.f32.mrb[0].mxu0
  %v169 = vadd.f32 0.0, %v168
  %v170 = vpop.f32.mrb[0].mxu0
  %v171 = vpop.f32.mrb[0].mxu0
  %v172 = vpop.f32.mrb[0].mxu0
  %173 = vdwg.mxu0
  %v178 = vcombine.low %v15, %v16
  %v179 = vcombine.low %v17, %v18
  %v181 = vunpack.c.l.s4 1966171168
  %v182 = vunpack.c.0.s8 %v181
  %v183 = vlaneseq
  %v184 = vshrl.u32 %v183, 7
  %v185 = vsub.s32 %v182, %v184
  %v186 = vrot.slane %v178, %v185
  %v188 = vunpack.c.l.s4 1966171168
  %v189 = vunpack.c.0.s8 %v188
  %v190 = vlaneseq
  %v191 = vshrl.u32 %v190, 7
  %v192 = vsub.s32 %v189, %v191
  %v193 = vrot.slane %v179, %v192
  %v194 = vcombine.low %v186, %v193
  %v196 = vunpack.c.l.s4 1966171168
  %v197 = vunpack.c.0.s8 %v196
  %v198 = vlaneseq
  %v199 = vshrl.u32 %v198, 7
  %v200 = vsub.s32 %v197, %v199
  %v201 = vrot.slane %v194, %v200
  %v219 = vunpack.c.l.b16 %v19
  %v220 = vunpack.c.l.b16 %v20
  %v221 = vunpack.c.l.b16 %v21
  %v222 = vunpack.c.l.b16 %v22
  %v223 = vunpack.c.l.b16 %v23
  %v224 = vunpack.c.l.b16 %v24
  %v225 = vunpack.c.l.b16 %v25
  %v226 = vunpack.c.l.b16 %v26
  %v227 = vunpack.c.l.b16 %v27
  %v228 = vunpack.c.l.b16 %v28
  %v229 = vunpack.c.l.b16 %v29
  %v230 = vunpack.c.l.b16 %v30
  %v231 = vunpack.c.l.b16 %v31
  %v232 = vunpack.c.l.b16 %v32
  %v233 = vunpack.c.l.b16 %v33
  %v234 = vunpack.c.l.b16 %v34
  %v235 = vpack.c.b16 %v220, %v219
  %v236 = vpack.c.b16 %v222, %v221
  %v237 = vpack.c.b16 %v224, %v223
  %v238 = vpack.c.b16 %v226, %v225
  %v239 = vpack.c.b16 %v228, %v227
  %v240 = vpack.c.b16 %v230, %v229
  %v241 = vpack.c.b16 %v232, %v231
  %v242 = vpack.c.b16 %v234, %v233
  %251 = vmatprep.subr.bf16.mxu0 0
  %252 = vmatpush1.bf16.msra.mxu0 %v235
  %253 = vmatprep.subr.bf16.mxu0 0
  %254 = vmatpush1.bf16.msra.mxu0 %v236
  %255 = vmatprep.subr.bf16.mxu0 0
  %256 = vmatpush1.bf16.msra.mxu0 %v237
  %257 = vmatprep.subr.bf16.mxu0 0
  %258 = vmatpush1.bf16.msra.mxu0 %v238
  %259 = vmatprep.subr.bf16.mxu0 0
  %260 = vmatpush1.bf16.msra.mxu0 %v239
  %261 = vmatprep.subr.bf16.mxu0 0
  %262 = vmatpush1.bf16.msra.mxu0 %v240
  %263 = vmatprep.subr.bf16.mxu0 0
  %264 = vmatpush1.bf16.msra.mxu0 %v241
  %265 = vmatprep.subr.bf16.mxu0 0
  %266 = vmatpush1.bf16.msra.mxu0 %v242
  %267 = vmatprep.subr.bf16.mxu0 0
  %268 = vmatpush1.bf16.msra.mxu0 0
  %269 = vmatprep.subr.bf16.mxu0 0
  %270 = vmatpush1.bf16.msra.mxu0 0
  %271 = vmatprep.subr.bf16.mxu0 0
  %272 = vmatpush1.bf16.msra.mxu0 0
  %273 = vmatprep.subr.bf16.mxu0 0
  %274 = vmatpush1.bf16.msra.mxu0 0
  %275 = vmatprep.subr.bf16.mxu0 0
  %276 = vmatpush1.bf16.msra.mxu0 0
  %277 = vmatprep.subr.bf16.mxu0 0
  %278 = vmatpush1.bf16.msra.mxu0 0
  %279 = vmatprep.subr.bf16.mxu0 0
  %280 = vmatpush1.bf16.msra.mxu0 0
  %281 = vmatprep.subr.bf16.mxu0 0
  %282 = vmatpush1.bf16.msra.mxu0 0
  %283 = vmatprep.mubr.bf16.mxu0 0
  %284 = vmatmul.mubr.bf16.gmra.mrb[0].mxu0 %v201
  %v285 = vpop.f32.mrb[0].mxu0
  %v286 = vadd.f32 %v169, %v285
  %v287 = vpop.f32.mrb[0].mxu0
  %v288 = vpop.f32.mrb[0].mxu0
  %v289 = vpop.f32.mrb[0].mxu0
  %290 = vdwg.mxu0
  %v291 = vld [vmem:[%s2] sm:$0x1]
  %v293 = vlaneseq
  %v294 = vshrl.u32 %v293, 7
  %v295 = vsub.s32 0, %v294
  %v296 = vrot.slane %v291, %v295
  %v298 = vadd.f32 %v286, %v296
  %v300 = vcombine.high %v298, %v298
  %v302 = vunpack.c.l.s4 1983009808
  %v303 = vunpack.c.0.s8 %v302
  %v304 = vlaneseq
  %v305 = vshrl.u32 %v304, 7
  %v306 = vsub.s32 %v303, %v305
  %v307 = vrot.slane %v298, %v306
  %v309 = vunpack.c.l.s4 1983009808
  %v310 = vunpack.c.0.s8 %v309
  %v311 = vlaneseq
  %v312 = vshrl.u32 %v311, 7
  %v313 = vsub.s32 %v310, %v312
  %v314 = vrot.slane %v300, %v313
  %v315 = vcombine.high %v307, %v307
  %v316 = vcombine.high %v314, %v314
  %v321 = vpack.c.bf16 %v307, %v307
  %v322 = vpack.c.bf16 %v315, %v315
  %v323 = vpack.c.bf16 %v314, %v314
  %v324 = vpack.c.bf16 %v316, %v316
  %325 = vst [vmem:[%s3] sm:$0x1] %v321
  %326 = vst [vmem:[%s3 + $0x1] sm:$0x1] %v322
  %327 = vst [vmem:[%s3 + $0x2] sm:$0x1] %v323
  %328 = vst [vmem:[%s3 + $0x3] sm:$0x1] %v324
  // Predicated region
  $region14: #{sam_video_frame_encoder_forward.8} parent=0 // pred_check
    _
  $region15: #{sam_video_frame_encoder_forward.8} parent=0 // pred_check_branch
    %330 = sbr.rel (0) target = $region17
  $region16: #{sam_video_frame_encoder_forward.8} parent=0 // pred_region
    _
  $region17: #{sam_video_frame_encoder_forward.8} parent=0 // pred_fallthru
    _
  // Predicated region
  $region18: #{sam_video_frame_encoder_forward.8} parent=0 // pred_check
    _
  $region19: #{sam_video_frame_encoder_forward.8} parent=0 // pred_check_branch
    %332 = sbr.rel (0) target = $region21
  $region20: #{sam_video_frame_encoder_forward.8} parent=0 // pred_region
    _
  $region21: #{sam_video_frame_encoder_forward.8} parent=0 // pred_fallthru
    _

// kernel: sam_video_frame_encoder_forward.7
$region0: #{sam_video_frame_encoder_forward.7}
  #allocation0 [shape = 'u32[]', space=smem, size = 0x4, offset = 0x4, fixed_abs, tag = 'smem constant byte address 0x4 - core index']
  #allocation1 [shape = 'u32[144,128]{1,0:T(1,128)}', space=vmem, size = 0x12000, scoped, tag = 'internal scratch']
  %s0 = inlined_call_operand.vmem [shape: bf16[8,2,4,64], index: 0, kind: input, shape index: {}]
  %s1 = inlined_call_operand.vmem [shape: bf16[2,64,64], index: 1, kind: input, shape index: {}]
  %s2 = inlined_call_operand.vmem [shape: f32[1,64], index: 2, kind: input, shape index: {}]
  %s3 = inlined_call_operand.vmem [shape: bf16[8,4,64], index: 3, kind: output, shape index: {}]
  %s4 = sld [smem:[#allocation0]]
  $region22: #{sam_video_frame_encoder_forward.7} parent=0
    _
  %s6 = ssub.s32 1, %s4
  %s7 = scalar_select 0, %s6, %s4
  // Predicated region
  $region2: #{sam_video_frame_encoder_forward.7} parent=0 // pred_check
    _
  $region3: #{sam_video_frame_encoder_forward.7} parent=0 // pred_check_branch
    %9 = sbr.rel (0) target = $region5
  $region4: #{sam_video_frame_encoder_forward.7} parent=0 // pred_region
    _
  $region5: #{sam_video_frame_encoder_forward.7} parent=0 // pred_fallthru
    _
  // Predicated region
  $region6: #{sam_video_frame_encoder_forward.7} parent=0 // pred_check
    _
  $region7: #{sam_video_frame_encoder_forward.7} parent=0 // pred_check_branch
    %11 = sbr.rel (0) target = $region9
  $region8: #{sam_video_frame_encoder_forward.7} parent=0 // pred_region
    _
  $region9: #{sam_video_frame_encoder_forward.7} parent=0 // pred_fallthru
    _
  // Predicated region
  $region10: #{sam_video_frame_encoder_forward.7} parent=0 // pred_check
    _
  $region11: #{sam_video_frame_encoder_forward.7} parent=0 // pred_check_branch
    %13 = sbr.rel (0) target = $region13
  $region12: #{sam_video_frame_encoder_forward.7} parent=0 // pred_region
    _
  $region13: #{sam_video_frame_encoder_forward.7} parent=0 // pred_fallthru
    _
  %v15 = vld [vmem:[%s0] sm:$0x3]
  %v16 = vld [vmem:[%s0 + $0x4] sm:$0x3]
  %v17 = vld [vmem:[%s0 + $0x8] sm:$0x3]
  %v18 = vld [vmem:[%s0 + $0xc] sm:$0x3]
  %v19 = vld [vmem:[%s0 + $0x10] sm:$0x3]
  %v20 = vld [vmem:[%s0 + $0x14] sm:$0x3]
  %v21 = vld [vmem:[%s0 + $0x18] sm:$0x3]
  %v22 = vld [vmem:[%s0 + $0x1c] sm:$0x3]
  %v23 = vld [vmem:[%s1] sm:$0xf]
  %v24 = vld [vmem:[%s1 + $0x4] sm:$0xf]
  %v25 = vld [vmem:[%s1 + $0x8] sm:$0xf]
  %v26 = vld [vmem:[%s1 + $0xc] sm:$0xf]
  %v27 = vld [vmem:[%s1 + $0x10] sm:$0xf]
  %v28 = vld [vmem:[%s1 + $0x14] sm:$0xf]
  %v29 = vld [vmem:[%s1 + $0x18] sm:$0xf]
  %v30 = vld [vmem:[%s1 + $0x1c] sm:$0xf]
  %s31 = scalar_lea.vmem %s0, 2
  %v32 = vld [vmem:[%s31] sm:$0x3]
  %v33 = vld [vmem:[%s31 + $0x4] sm:$0x3]
  %v34 = vld [vmem:[%s31 + $0x8] sm:$0x3]
  %v35 = vld [vmem:[%s31 + $0xc] sm:$0x3]
  %v36 = vld [vmem:[%s31 + $0x10] sm:$0x3]
  %v37 = vld [vmem:[%s31 + $0x14] sm:$0x3]
  %v38 = vld [vmem:[%s31 + $0x18] sm:$0x3]
  %v39 = vld [vmem:[%s31 + $0x1c] sm:$0x3]
  %s40 = scalar_lea.vmem %s1, 32
  %v41 = vld [vmem:[%s40] sm:$0xf]
  %v42 = vld [vmem:[%s40 + $0x4] sm:$0xf]
  %v43 = vld [vmem:[%s40 + $0x8] sm:$0xf]
  %v44 = vld [vmem:[%s40 + $0xc] sm:$0xf]
  %v45 = vld [vmem:[%s40 + $0x10] sm:$0xf]
  %v46 = vld [vmem:[%s40 + $0x14] sm:$0xf]
  %v47 = vld [vmem:[%s40 + $0x18] sm:$0xf]
  %v48 = vld [vmem:[%s40 + $0x1c] sm:$0xf]
  %v57 = vcombine.low %v32, %v33
  %v58 = vcombine.low %v34, %v35
  %v60 = vunpack.c.l.s4 1983009808
  %v61 = vunpack.c.0.s8 %v60
  %v62 = vlaneseq
  %v63 = vshrl.u32 %v62, 7
  %v64 = vsub.s32 %v61, %v63
  %v65 = vrot.slane %v57, %v64
  %v67 = vunpack.c.l.s4 1983009808
  %v68 = vunpack.c.0.s8 %v67
  %v69 = vlaneseq
  %v70 = vshrl.u32 %v69, 7
  %v71 = vsub.s32 %v68, %v70
  %v72 = vrot.slane %v58, %v71
  %v73 = vcombine.low %v65, %v72
  %v74 = vcombine.low %v36, %v37
  %v75 = vcombine.low %v38, %v39
  %v77 = vunpack.c.l.s4 1983009808
  %v78 = vunpack.c.0.s8 %v77
  %v79 = vlaneseq
  %v80 = vshrl.u32 %v79, 7
  %v81 = vsub.s32 %v78, %v80
  %v82 = vrot.slane %v74, %v81
  %v84 = vunpack.c.l.s4 1983009808
  %v85 = vunpack.c.0.s8 %v84
  %v86 = vlaneseq
  %v87 = vshrl.u32 %v86, 7
  %v88 = vsub.s32 %v85, %v87
  %v89 = vrot.slane %v75, %v88
  %v90 = vcombine.low %v82, %v89
  %v99 = vunpack.c.l.b16 %v41
  %v100 = vunpack.c.l.b16 %v42
  %v101 = vunpack.c.l.b16 %v43
  %v102 = vunpack.c.l.b16 %v44
  %v103 = vunpack.c.l.b16 %v45
  %v104 = vunpack.c.l.b16 %v46
  %v105 = vunpack.c.l.b16 %v47
  %v106 = vunpack.c.l.b16 %v48
  %v107 = vpack.c.b16 %v100, %v99
  %v108 = vpack.c.b16 %v102, %v101
  %v109 = vpack.c.b16 %v104, %v103
  %v110 = vpack.c.b16 %v106, %v105
  %vm115 = vcmask 523264
  %v117 = vsel %vm115, %v73, 0
  %v120 = vsel %vm115, %v90, 0
  %122 = vmatprep.subr.bf16.mxu0 0
  %123 = vmatpush1.bf16.msra.mxu0 %v107
  %124 = vmatprep.subr.bf16.mxu0 0
  %125 = vmatpush1.bf16.msra.mxu0 %v108
  %126 = vmatprep.subr.bf16.mxu0 0
  %127 = vmatpush1.bf16.msra.mxu0 %v109
  %128 = vmatprep.subr.bf16.mxu0 0
  %129 = vmatpush1.bf16.msra.mxu0 %v110
  %130 = vmatprep.subr.bf16.mxu0 0
  %131 = vmatpush1.bf16.msra.mxu0 0
  %132 = vmatprep.subr.bf16.mxu0 0
  %133 = vmatpush1.bf16.msra.mxu0 0
  %134 = vmatprep.subr.bf16.mxu0 0
  %135 = vmatpush1.bf16.msra.mxu0 0
  %136 = vmatprep.subr.bf16.mxu0 0
  %137 = vmatpush1.bf16.msra.mxu0 0
  %138 = vmatprep.subr.bf16.mxu0 0
  %139 = vmatpush1.bf16.msra.mxu0 0
  %140 = vmatprep.subr.bf16.mxu0 0
  %141 = vmatpush1.bf16.msra.mxu0 0
  %142 = vmatprep.subr.bf16.mxu0 0
  %143 = vmatpush1.bf16.msra.mxu0 0
  %144 = vmatprep.subr.bf16.mxu0 0
  %145 = vmatpush1.bf16.msra.mxu0 0
  %146 = vmatprep.subr.bf16.mxu0 0
  %147 = vmatpush1.bf16.msra.mxu0 0
  %148 = vmatprep.subr.bf16.mxu0 0
  %149 = vmatpush1.bf16.msra.mxu0 0
  %150 = vmatprep.subr.bf16.mxu0 0
  %151 = vmatpush1.bf16.msra.mxu0 0
  %152 = vmatprep.subr.bf16.mxu0 0
  %153 = vmatpush1.bf16.msra.mxu0 0
  %154 = vmatprep.mubr.bf16.mxu0 0
  %155 = vmatmul.mubr.bf16.gmra.mrb[0].mxu0 %v117
  %v156 = vpop.f32.mrb[0].mxu0
  %v157 = vadd.f32 0.0, %v156
  %v158 = vpop.f32.mrb[0].mxu0
  %v159 = vpop.f32.mrb[0].mxu0
  %v160 = vadd.f32 0.0, %v159
  %v161 = vpop.f32.mrb[0].mxu0
  %162 = vmatprep.mubr.bf16.mxu0 0
  %163 = vmatmul.mubr.bf16.gmra.mrb[0].mxu0 %v120
  %v164 = vpop.f32.mrb[0].mxu0
  %v165 = vadd.f32 0.0, %v164
  %v166 = vpop.f32.mrb[0].mxu0
  %v167 = vpop.f32.mrb[0].mxu0
  %v168 = vadd.f32 0.0, %v167
  %v169 = vpop.f32.mrb[0].mxu0
  %170 = vdwg.mxu0
  %v179 = vcombine.low %v15, %v16
  %v180 = vcombine.low %v17, %v18
  %v182 = vunpack.c.l.s4 1983009808
  %v183 = vunpack.c.0.s8 %v182
  %v184 = vlaneseq
  %v185 = vshrl.u32 %v184, 7
  %v186 = vsub.s32 %v183, %v185
  %v187 = vrot.slane %v179, %v186
  %v189 = vunpack.c.l.s4 1983009808
  %v190 = vunpack.c.0.s8 %v189
  %v191 = vlaneseq
  %v192 = vshrl.u32 %v191, 7
  %v193 = vsub.s32 %v190, %v192
  %v194 = vrot.slane %v180, %v193
  %v195 = vcombine.low %v187, %v194
  %v196 = vcombine.low %v19, %v20
  %v197 = vcombine.low %v21, %v22
  %v199 = vunpack.c.l.s4 1983009808
  %v200 = vunpack.c.0.s8 %v199
  %v201 = vlaneseq
  %v202 = vshrl.u32 %v201, 7
  %v203 = vsub.s32 %v200, %v202
  %v204 = vrot.slane %v196, %v203
  %v206 = vunpack.c.l.s4 1983009808
  %v207 = vunpack.c.0.s8 %v206
  %v208 = vlaneseq
  %v209 = vshrl.u32 %v208, 7
  %v210 = vsub.s32 %v207, %v209
  %v211 = vrot.slane %v197, %v210
  %v212 = vcombine.low %v204, %v211
  %v221 = vunpack.c.l.b16 %v23
  %v222 = vunpack.c.l.b16 %v24
  %v223 = vunpack.c.l.b16 %v25
  %v224 = vunpack.c.l.b16 %v26
  %v225 = vunpack.c.l.b16 %v27
  %v226 = vunpack.c.l.b16 %v28
  %v227 = vunpack.c.l.b16 %v29
  %v228 = vunpack.c.l.b16 %v30
  %v229 = vpack.c.b16 %v222, %v221
  %v230 = vpack.c.b16 %v224, %v223
  %v231 = vpack.c.b16 %v226, %v225
  %v232 = vpack.c.b16 %v228, %v227
  %v238 = vsel %vm115, %v195, 0
  %v241 = vsel %vm115, %v212, 0
  %243 = vmatprep.subr.bf16.mxu0 0
  %244 = vmatpush1.bf16.msra.mxu0 %v229
  %245 = vmatprep.subr.bf16.mxu0 0
  %246 = vmatpush1.bf16.msra.mxu0 %v230
  %247 = vmatprep.subr.bf16.mxu0 0
  %248 = vmatpush1.bf16.msra.mxu0 %v231
  %249 = vmatprep.subr.bf16.mxu0 0
  %250 = vmatpush1.bf16.msra.mxu0 %v232
  %251 = vmatprep.subr.bf16.mxu0 0
  %252 = vmatpush1.bf16.msra.mxu0 0
  %253 = vmatprep.subr.bf16.mxu0 0
  %254 = vmatpush1.bf16.msra.mxu0 0
  %255 = vmatprep.subr.bf16.mxu0 0
  %256 = vmatpush1.bf16.msra.mxu0 0
  %257 = vmatprep.subr.bf16.mxu0 0
  %258 = vmatpush1.bf16.msra.mxu0 0
  %259 = vmatprep.subr.bf16.mxu0 0
  %260 = vmatpush1.bf16.msra.mxu0 0
  %261 = vmatprep.subr.bf16.mxu0 0
  %262 = vmatpush1.bf16.msra.mxu0 0
  %263 = vmatprep.subr.bf16.mxu0 0
  %264 = vmatpush1.bf16.msra.mxu0 0
  %265 = vmatprep.subr.bf16.mxu0 0
  %266 = vmatpush1.bf16.msra.mxu0 0
  %267 = vmatprep.subr.bf16.mxu0 0
  %268 = vmatpush1.bf16.msra.mxu0 0
  %269 = vmatprep.subr.bf16.mxu0 0
  %270 = vmatpush1.bf16.msra.mxu0 0
  %271 = vmatprep.subr.bf16.mxu0 0
  %272 = vmatpush1.bf16.msra.mxu0 0
  %273 = vmatprep.subr.bf16.mxu0 0
  %274 = vmatpush1.bf16.msra.mxu0 0
  %275 = vmatprep.mubr.bf16.mxu0 0
  %276 = vmatmul.mubr.bf16.gmra.mrb[0].mxu0 %v238
  %v277 = vpop.f32.mrb[0].mxu0
  %v278 = vadd.f32 %v157, %v277
  %v279 = vpop.f32.mrb[0].mxu0
  %v280 = vpop.f32.mrb[0].mxu0
  %v281 = vadd.f32 %v160, %v280
  %v282 = vpop.f32.mrb[0].mxu0
  %283 = vmatprep.mubr.bf16.mxu0 0
  %284 = vmatmul.mubr.bf16.gmra.mrb[0].mxu0 %v241
  %v285 = vpop.f32.mrb[0].mxu0
  %v286 = vadd.f32 %v165, %v285
  %v287 = vpop.f32.mrb[0].mxu0
  %v288 = vpop.f32.mrb[0].mxu0
  %v289 = vadd.f32 %v168, %v288
  %v290 = vpop.f32.mrb[0].mxu0
  %291 = vdwg.mxu0
  %v292 = vld [vmem:[%s2] sm:$0x1]
  %v294 = vlaneseq
  %v295 = vshrl.u32 %v294, 7
  %v296 = vsub.s32 0, %v295
  %v297 = vrot.slane %v292, %v296
  %v299 = vadd.f32 %v278, %v297
  %v300 = vadd.f32 %v281, %v297
  %v301 = vadd.f32 %v286, %v297
  %v302 = vadd.f32 %v289, %v297
  %v307 = vcombine.high %v299, %v299
  %v308 = vcombine.high %v300, %v300
  %v309 = vcombine.high %v301, %v301
  %v310 = vcombine.high %v302, %v302
  %v315 = vpack.c.bf16 %v299, %v299
  %v316 = vpack.c.bf16 %v307, %v307
  %v317 = vpack.c.bf16 %v300, %v300
  %v318 = vpack.c.bf16 %v308, %v308
  %v319 = vpack.c.bf16 %v301, %v301
  %v320 = vpack.c.bf16 %v309, %v309
  %v321 = vpack.c.bf16 %v302, %v302
  %v322 = vpack.c.bf16 %v310, %v310
  %vm323 = vcmask 517120
  %324 = vst.msk [vmem:[%s3] sm:$0x3] %vm323, %v315
  %325 = vst.msk [vmem:[%s3 + $0x2] sm:$0x3] %vm323, %v316
  %326 = vst.msk [vmem:[%s3 + $0x4] sm:$0x3] %vm323, %v317
  %327 = vst.msk [vmem:[%s3 + $0x6] sm:$0x3] %vm323, %v318
  %328 = vst.msk [vmem:[%s3 + $0x8] sm:$0x3] %vm323, %v319
  %329 = vst.msk [vmem:[%s3 + $0xa] sm:$0x3] %vm323, %v320
  %330 = vst.msk [vmem:[%s3 + $0xc] sm:$0x3] %vm323, %v321
  %331 = vst.msk [vmem:[%s3 + $0xe] sm:$0x3] %vm323, %v322
  // Predicated region
  $region14: #{sam_video_frame_encoder_forward.7} parent=0 // pred_check
    _
  $region15: #{sam_video_frame_encoder_forward.7} parent=0 // pred_check_branch
    %333 = sbr.rel (0) target = $region17
  $region16: #{sam_video_frame_encoder_forward.7} parent=0 // pred_region
    _
  $region17: #{sam_video_frame_encoder_forward.7} parent=0 // pred_fallthru
    _
  // Predicated region
  $region18: #{sam_video_frame_encoder_forward.7} parent=0 // pred_check
    _
  $region19: #{sam_video_frame_encoder_forward.7} parent=0 // pred_check_branch
    %335 = sbr.rel (0) target = $region21
  $region20: #{sam_video_frame_encoder_forward.7} parent=0 // pred_region
    _
  $region21: #{sam_video_frame_encoder_forward.7} parent=0 // pred_fallthru
    _

// kernel: sam_video_frame_encoder_forward.10
$region0: #{sam_video_frame_encoder_forward.10}
  #allocation0 [shape = 'u32[]', space=smem, size = 0x4, offset = 0x4, fixed_abs, tag = 'smem constant byte address 0x4 - core index']
  #allocation1 [shape = 'u32[144,128]{1,0:T(1,128)}', space=vmem, size = 0x12000, scoped, tag = 'internal scratch']
  %s0 = inlined_call_operand.vmem [shape: bf16[32,64], index: 0, kind: input, shape index: {}]
  %s1 = inlined_call_operand.vmem [shape: bf16[64,32], index: 1, kind: input, shape index: {}]
  %s2 = inlined_call_operand.vmem [shape: f32[1,32], index: 2, kind: input, shape index: {}]
  %s3 = inlined_call_operand.vmem [shape: bf16[16,32], index: 3, kind: input, shape index: {}]
  %s4 = inlined_call_operand.vmem [shape: bf16[32,8], index: 4, kind: input, shape index: {}]
  %s5 = inlined_call_operand.vmem [shape: f32[1,8], index: 5, kind: input, shape index: {}]
  %s6 = inlined_call_operand.vmem [shape: bf16[32,32], index: 6, kind: output, shape index: {0}]
  %s7 = inlined_call_operand.vmem [shape: bf16[32,8], index: 7, kind: output, shape index: {1}]
  %8 = xla_tuple %s6, %s7
  %s9 = sld [smem:[#allocation0]]
  $region42: #{sam_video_frame_encoder_forward.10} parent=0
    _
  %s11 = ssub.s32 1, %s9
  %s12 = scalar_select 0, %s11, %s9
  // Predicated region
  $region2: #{sam_video_frame_encoder_forward.10} parent=0 // pred_check
    _
  $region3: #{sam_video_frame_encoder_forward.10} parent=0 // pred_check_branch
    %14 = sbr.rel (0) target = $region5
  $region4: #{sam_video_frame_encoder_forward.10} parent=0 // pred_region
    _
  $region5: #{sam_video_frame_encoder_forward.10} parent=0 // pred_fallthru
    _
  // Predicated region
  $region6: #{sam_video_frame_encoder_forward.10} parent=0 // pred_check
    _
  $region7: #{sam_video_frame_encoder_forward.10} parent=0 // pred_check_branch
    %16 = sbr.rel (0) target = $region9
  $region8: #{sam_video_frame_encoder_forward.10} parent=0 // pred_region
    _
  $region9: #{sam_video_frame_encoder_forward.10} parent=0 // pred_fallthru
    _
  // Predicated region
  $region10: #{sam_video_frame_encoder_forward.10} parent=0 // pred_check
    _
  $region11: #{sam_video_frame_encoder_forward.10} parent=0 // pred_check_branch
    %18 = sbr.rel (0) target = $region13
  $region12: #{sam_video_frame_encoder_forward.10} parent=0 // pred_region
    _
  $region13: #{sam_video_frame_encoder_forward.10} parent=0 // pred_fallthru
    _
  // Predicated region
  $region14: #{sam_video_frame_encoder_forward.10} parent=0 // pred_check
    _
  $region15: #{sam_video_frame_encoder_forward.10} parent=0 // pred_check_branch
    %20 = sbr.rel (0) target = $region17
  $region16: #{sam_video_frame_encoder_forward.10} parent=0 // pred_region
    _
  $region17: #{sam_video_frame_encoder_forward.10} parent=0 // pred_fallthru
    _
  // Predicated region
  $region18: #{sam_video_frame_encoder_forward.10} parent=0 // pred_check
    _
  $region19: #{sam_video_frame_encoder_forward.10} parent=0 // pred_check_branch
    %22 = sbr.rel (0) target = $region21
  $region20: #{sam_video_frame_encoder_forward.10} parent=0 // pred_region
    _
  $region21: #{sam_video_frame_encoder_forward.10} parent=0 // pred_fallthru
    _
  // Predicated region
  $region22: #{sam_video_frame_encoder_forward.10} parent=0 // pred_check
    _
  $region23: #{sam_video_frame_encoder_forward.10} parent=0 // pred_check_branch
    %24 = sbr.rel (0) target = $region25
  $region24: #{sam_video_frame_encoder_forward.10} parent=0 // pred_region
    _
  $region25: #{sam_video_frame_encoder_forward.10} parent=0 // pred_fallthru
    _
  %v26 = vld [vmem:[%s0] sm:$0xf]
  %v27 = vld [vmem:[%s0 + $0x4] sm:$0xf]
  %v28 = vld [vmem:[%s0 + $0x8] sm:$0xf]
  %v29 = vld [vmem:[%s0 + $0xc] sm:$0xf]
  %v30 = vld [vmem:[%s1] sm:$0xf]
  %v31 = vld [vmem:[%s1 + $0x4] sm:$0xf]
  %v32 = vld [vmem:[%s1 + $0x8] sm:$0xf]
  %v33 = vld [vmem:[%s1 + $0xc] sm:$0xf]
  %v34 = vld [vmem:[%s1 + $0x10] sm:$0xf]
  %v35 = vld [vmem:[%s1 + $0x14] sm:$0xf]
  %v36 = vld [vmem:[%s1 + $0x18] sm:$0xf]
  %v37 = vld [vmem:[%s1 + $0x1c] sm:$0xf]
  %v38 = vld [vmem:[%s2] sm:$0x1]
  %v40 = vlaneseq
  %v41 = vshrl.u32 %v40, 7
  %v42 = vsub.s32 0, %v41
  %v43 = vrot.slane %v38, %v42
  %v49 = vunpack.c.l.b16 %v26
  %v50 = vunpack.c.l.b16 %v27
  %v51 = vunpack.c.l.b16 %v28
  %v52 = vunpack.c.l.b16 %v29
  %v53 = vpack.c.b16 %v50, %v49
  %v54 = vpack.c.b16 %v52, %v51
  %v63 = vunpack.c.l.b16 %v30
  %v64 = vunpack.c.l.b16 %v31
  %v65 = vunpack.c.l.b16 %v32
  %v66 = vunpack.c.l.b16 %v33
  %v67 = vunpack.c.l.b16 %v34
  %v68 = vunpack.c.l.b16 %v35
  %v69 = vunpack.c.l.b16 %v36
  %v70 = vunpack.c.l.b16 %v37
  %v71 = vpack.c.b16 %v64, %v63
  %v72 = vpack.c.b16 %v66, %v65
  %v73 = vpack.c.b16 %v68, %v67
  %v74 = vpack.c.b16 %v70, %v69
  %vm79 = vcmask 523264
  %v81 = vsel %vm79, %v53, 0
  %v84 = vsel %vm79, %v54, 0
  %86 = vmatprep.subr.bf16.mxu0 0
  %87 = vmatpush1.bf16.msra.mxu0 %v71
  %88 = vmatprep.subr.bf16.mxu0 0
  %89 = vmatpush1.bf16.msra.mxu0 %v72
  %90 = vmatprep.subr.bf16.mxu0 0
  %91 = vmatpush1.bf16.msra.mxu0 %v73
  %92 = vmatprep.subr.bf16.mxu0 0
  %93 = vmatpush1.bf16.msra.mxu0 %v74
  %94 = vmatprep.subr.bf16.mxu0 0
  %95 = vmatpush1.bf16.msra.mxu0 0
  %96 = vmatprep.subr.bf16.mxu0 0
  %97 = vmatpush1.bf16.msra.mxu0 0
  %98 = vmatprep.subr.bf16.mxu0 0
  %99 = vmatpush1.bf16.msra.mxu0 0
  %100 = vmatprep.subr.bf16.mxu0 0
  %101 = vmatpush1.bf16.msra.mxu0 0
  %102 = vmatprep.subr.bf16.mxu0 0
  %103 = vmatpush1.bf16.msra.mxu0 0
  %104 = vmatprep.subr.bf16.mxu0 0
  %105 = vmatpush1.bf16.msra.mxu0 0
  %106 = vmatprep.subr.bf16.mxu0 0
  %107 = vmatpush1.bf16.msra.mxu0 0
  %108 = vmatprep.subr.bf16.mxu0 0
  %109 = vmatpush1.bf16.msra.mxu0 0
  %110 = vmatprep.subr.bf16.mxu0 0
  %111 = vmatpush1.bf16.msra.mxu0 0
  %112 = vmatprep.subr.bf16.mxu0 0
  %113 = vmatpush1.bf16.msra.mxu0 0
  %114 = vmatprep.subr.bf16.mxu0 0
  %115 = vmatpush1.bf16.msra.mxu0 0
  %116 = vmatprep.subr.bf16.mxu0 0
  %117 = vmatpush1.bf16.msra.mxu0 0
  %118 = vmatprep.mubr.bf16.mxu0 0
  %119 = vmatmul.mubr.bf16.gmra.mrb[0].mxu0 %v81
  %v120 = vpop.f32.mrb[0].mxu0
  %v121 = vadd.f32 %v43, %v120
  %v122 = vpop.f32.mrb[0].mxu0
  %v123 = vpop.f32.mrb[0].mxu0
  %v124 = vadd.f32 %v43, %v123
  %v125 = vpop.f32.mrb[0].mxu0
  %126 = vmatprep.mubr.bf16.mxu0 0
  %127 = vmatmul.mubr.bf16.gmra.mrb[0].mxu0 %v84
  %v128 = vpop.f32.mrb[0].mxu0
  %v129 = vadd.f32 %v43, %v128
  %v130 = vpop.f32.mrb[0].mxu0
  %v131 = vpop.f32.mrb[0].mxu0
  %v132 = vadd.f32 %v43, %v131
  %v133 = vpop.f32.mrb[0].mxu0
  %134 = vdwg.mxu0
  %v135 = vld [vmem:[%s3] sm:$0xf]
  %v136 = vld [vmem:[%s3 + $0x4] sm:$0xf]
  %v137 = vunpack.c.l.bf16 %v135
  %v138 = vunpack.c.l.bf16 %v136
  %v141 = vcombine.high %v137, %v137
  %v142 = vcombine.high %v138, %v138
  %v143 = vcombine.low %v137, %v137
  %v144 = vcombine.low %v141, %v141
  %v145 = vcombine.low %v138, %v138
  %v146 = vcombine.low %v142, %v142
  %v151 = vadd.f32 %v121, %v143
  %v152 = vadd.f32 %v124, %v144
  %v153 = vadd.f32 %v129, %v145
  %v154 = vadd.f32 %v132, %v146
  %v155 = vpack.c.bf16 %v152, %v151
  %v156 = vpack.c.bf16 %v154, %v153
  %v159 = vunpack.c.l.b16 %v155
  %v160 = vunpack.c.h.b16 %v155
  %v161 = vunpack.c.l.b16 %v156
  %v162 = vunpack.c.h.b16 %v156
  %v163 = vpack.c.b16 %v159, %v159
  %v164 = vpack.c.b16 %v160, %v160
  %v165 = vpack.c.b16 %v161, %v161
  %v166 = vpack.c.b16 %v162, %v162
  %vm171 = vcmask 257024
  %172 = vst.msk [vmem:[%s6] sm:$0xf] %vm171, %v163
  %173 = vst.msk [vmem:[%s6 + $0x4] sm:$0xf] %vm171, %v164
  %174 = vst.msk [vmem:[%s6 + $0x8] sm:$0xf] %vm171, %v165
  %175 = vst.msk [vmem:[%s6 + $0xc] sm:$0xf] %vm171, %v166
  %v176 = vld [vmem:[%s4] sm:$0xf]
  %v177 = vld [vmem:[%s4 + $0x4] sm:$0xf]
  %v178 = vld [vmem:[%s4 + $0x8] sm:$0xf]
  %v179 = vld [vmem:[%s4 + $0xc] sm:$0xf]
  %v180 = vld [vmem:[%s5] sm:$0x1]
  %v182 = vlaneseq
  %v183 = vshrl.u32 %v182, 7
  %v184 = vsub.s32 0, %v183
  %v185 = vrot.slane %v180, %v184
  %v191 = vunpack.c.l.b16 %v176
  %v192 = vunpack.c.l.b16 %v177
  %v193 = vunpack.c.l.b16 %v178
  %v194 = vunpack.c.l.b16 %v179
  %v195 = vpack.c.b16 %v192, %v191
  %v196 = vpack.c.b16 %v194, %v193
  %vm199 = vcmask 261120
  %v201 = vsel %vm199, %v155, 0
  %v204 = vsel %vm199, %v156, 0
  %206 = vmatprep.subr.bf16.mxu0 0
  %207 = vmatpush1.bf16.msra.mxu0 %v195
  %208 = vmatprep.subr.bf16.mxu0 0
  %209 = vmatpush1.bf16.msra.mxu0 %v196
  %210 = vmatprep.subr.bf16.mxu0 0
  %211 = vmatpush1.bf16.msra.mxu0 0
  %212 = vmatprep.subr.bf16.mxu0 0
  %213 = vmatpush1.bf16.msra.mxu0 0
  %214 = vmatprep.subr.bf16.mxu0 0
  %215 = vmatpush1.bf16.msra.mxu0 0
  %216 = vmatprep.subr.bf16.mxu0 0
  %217 = vmatpush1.bf16.msra.mxu0 0
  %218 = vmatprep.subr.bf16.mxu0 0
  %219 = vmatpush1.bf16.msra.mxu0 0
  %220 = vmatprep.subr.bf16.mxu0 0
  %221 = vmatpush1.bf16.msra.mxu0 0
  %222 = vmatprep.subr.bf16.mxu0 0
  %223 = vmatpush1.bf16.msra.mxu0 0
  %224 = vmatprep.subr.bf16.mxu0 0
  %225 = vmatpush1.bf16.msra.mxu0 0
  %226 = vmatprep.subr.bf16.mxu0 0
  %227 = vmatpush1.bf16.msra.mxu0 0
  %228 = vmatprep.subr.bf16.mxu0 0
  %229 = vmatpush1.bf16.msra.mxu0 0
  %230 = vmatprep.subr.bf16.mxu0 0
  %231 = vmatpush1.bf16.msra.mxu0 0
  %232 = vmatprep.subr.bf16.mxu0 0
  %233 = vmatpush1.bf16.msra.mxu0 0
  %234 = vmatprep.subr.bf16.mxu0 0
  %235 = vmatpush1.bf16.msra.mxu0 0
  %236 = vmatprep.subr.bf16.mxu0 0
  %237 = vmatpush1.bf16.msra.mxu0 0
  %238 = vmatprep.mubr.bf16.mxu0 0
  %239 = vmatmul.mubr.bf16.gmra.mrb[0].mxu0 %v201
  %v240 = vpop.f32.mrb[0].mxu0
  %v241 = vadd.f32 %v185, %v240
  %v242 = vpop.f32.mrb[0].mxu0
  %v243 = vpop.f32.mrb[0].mxu0
  %v244 = vadd.f32 %v185, %v243
  %v245 = vpop.f32.mrb[0].mxu0
  %246 = vmatprep.mubr.bf16.mxu0 0
  %247 = vmatmul.mubr.bf16.gmra.mrb[0].mxu0 %v204
  %v248 = vpop.f32.mrb[0].mxu0
  %v249 = vadd.f32 %v185, %v248
  %v250 = vpop.f32.mrb[0].mxu0
  %v251 = vpop.f32.mrb[0].mxu0
  %v252 = vadd.f32 %v185, %v251
  %v253 = vpop.f32.mrb[0].mxu0
  %254 = vdwg.mxu0
  %v255 = vpack.c.bf16 %v244, %v241
  %v256 = vpack.c.bf16 %v252, %v249
  %v259 = vunpack.c.l.b16 %v255
  %v260 = vunpack.c.h.b16 %v255
  %v261 = vunpack.c.l.b16 %v256
  %v262 = vunpack.c.h.b16 %v256
  %v263 = vpack.c.b16 %v259, %v259
  %v264 = vpack.c.b16 %v260, %v260
  %v265 = vpack.c.b16 %v261, %v261
  %v266 = vpack.c.b16 %v262, %v262
  %vm271 = vcmask 60416
  %272 = vst.msk [vmem:[%s7] sm:$0xf] %vm271, %v263
  %273 = vst.msk [vmem:[%s7 + $0x4] sm:$0xf] %vm271, %v264
  %274 = vst.msk [vmem:[%s7 + $0x8] sm:$0xf] %vm271, %v265
  %275 = vst.msk [vmem:[%s7 + $0xc] sm:$0xf] %vm271, %v266
  // Predicated region
  $region26: #{sam_video_frame_encoder_forward.10} parent=0 // pred_check
    _
  $region27: #{sam_video_frame_encoder_forward.10} parent=0 // pred_check_branch
    %277 = sbr.rel (0) target = $region29
  $region28: #{sam_video_frame_encoder_forward.10} parent=0 // pred_region
    _
  $region29: #{sam_video_frame_encoder_forward.10} parent=0 // pred_fallthru
    _
  // Predicated region
  $region30: #{sam_video_frame_encoder_forward.10} parent=0 // pred_check
    _
  $region31: #{sam_video_frame_encoder_forward.10} parent=0 // pred_check_branch
    %279 = sbr.rel (0) target = $region33
  $region32: #{sam_video_frame_encoder_forward.10} parent=0 // pred_region
    _
  $region33: #{sam_video_frame_encoder_forward.10} parent=0 // pred_fallthru
    _
  // Predicated region
  $region34: #{sam_video_frame_encoder_forward.10} parent=0 // pred_check
    _
  $region35: #{sam_video_frame_encoder_forward.10} parent=0 // pred_check_branch
    %281 = sbr.rel (0) target = $region37
  $region36: #{sam_video_frame_encoder_forward.10} parent=0 // pred_region
    _
  $region37: #{sam_video_frame_encoder_forward.10} parent=0 // pred_fallthru
    _
  // Predicated region
  $region38: #{sam_video_frame_encoder_forward.10} parent=0 // pred_check
    _
  $region39: #{sam_video_frame_encoder_forward.10} parent=0 // pred_check_branch
    %283 = sbr.rel (0) target = $region41
  $region40: #{sam_video_frame_encoder_forward.10} parent=0 // pred_region
    _
  $region41: #{sam_video_frame_encoder_forward.10} parent=0 // pred_fallthru
    _

// kernel: sam_video_frame_encoder_forward.11
$region0: #{sam_video_frame_encoder_forward.11}
  #allocation0 [shape = 'u32[]', space=smem, size = 0x4, offset = 0x4, fixed_abs, tag = 'smem constant byte address 0x4 - core index']
  #allocation1 [shape = 'u32[144,128]{1,0:T(1,128)}', space=vmem, size = 0x12000, scoped, tag = 'internal scratch']
  %s0 = inlined_call_operand.vmem [shape: bf16[128,32], index: 0, kind: input, shape index: {}]
  %s1 = inlined_call_operand.vmem [shape: bf16[32,32], index: 1, kind: input, shape index: {}]
  %s2 = inlined_call_operand.vmem [shape: f32[1,32], index: 2, kind: input, shape index: {}]
  %s3 = inlined_call_operand.vmem [shape: bf16[64,32], index: 3, kind: input, shape index: {}]
  %s4 = inlined_call_operand.vmem [shape: bf16[32,4], index: 4, kind: input, shape index: {}]
  %s5 = inlined_call_operand.vmem [shape: f32[1,4], index: 5, kind: input, shape index: {}]
  %s6 = inlined_call_operand.vmem [shape: bf16[128,4], index: 6, kind: output, shape index: {}]
  %s7 = sld [smem:[#allocation0]]
  $region34: #{sam_video_frame_encoder_forward.11} parent=0
    _
  %s9 = ssub.s32 1, %s7
  %s10 = scalar_select 0, %s9, %s7
  // Predicated region
  $region2: #{sam_video_frame_encoder_forward.11} parent=0 // pred_check
    _
  $region3: #{sam_video_frame_encoder_forward.11} parent=0 // pred_check_branch
    %12 = sbr.rel (0) target = $region5
  $region4: #{sam_video_frame_encoder_forward.11} parent=0 // pred_region
    _
  $region5: #{sam_video_frame_encoder_forward.11} parent=0 // pred_fallthru
    _
  // Predicated region
  $region6: #{sam_video_frame_encoder_forward.11} parent=0 // pred_check
    _
  $region7: #{sam_video_frame_encoder_forward.11} parent=0 // pred_check_branch
    %14 = sbr.rel (0) target = $region9
  $region8: #{sam_video_frame_encoder_forward.11} parent=0 // pred_region
    _
  $region9: #{sam_video_frame_encoder_forward.11} parent=0 // pred_fallthru
    _
  // Predicated region
  $region10: #{sam_video_frame_encoder_forward.11} parent=0 // pred_check
    _
  $region11: #{sam_video_frame_encoder_forward.11} parent=0 // pred_check_branch
    %16 = sbr.rel (0) target = $region13
  $region12: #{sam_video_frame_encoder_forward.11} parent=0 // pred_region
    _
  $region13: #{sam_video_frame_encoder_forward.11} parent=0 // pred_fallthru
    _
  // Predicated region
  $region14: #{sam_video_frame_encoder_forward.11} parent=0 // pred_check
    _
  $region15: #{sam_video_frame_encoder_forward.11} parent=0 // pred_check_branch
    %18 = sbr.rel (0) target = $region17
  $region16: #{sam_video_frame_encoder_forward.11} parent=0 // pred_region
    _
  $region17: #{sam_video_frame_encoder_forward.11} parent=0 // pred_fallthru
    _
  // Predicated region
  $region18: #{sam_video_frame_encoder_forward.11} parent=0 // pred_check
    _
  $region19: #{sam_video_frame_encoder_forward.11} parent=0 // pred_check_branch
    %20 = sbr.rel (0) target = $region21
  $region20: #{sam_video_frame_encoder_forward.11} parent=0 // pred_region
    _
  $region21: #{sam_video_frame_encoder_forward.11} parent=0 // pred_fallthru
    _
  // Predicated region
  $region22: #{sam_video_frame_encoder_forward.11} parent=0 // pred_check
    _
  $region23: #{sam_video_frame_encoder_forward.11} parent=0 // pred_check_branch
    %22 = sbr.rel (0) target = $region25
  $region24: #{sam_video_frame_encoder_forward.11} parent=0 // pred_region
    _
  $region25: #{sam_video_frame_encoder_forward.11} parent=0 // pred_fallthru
    _
  %v24 = vld [vmem:[%s0] sm:$0xf]
  %v25 = vld [vmem:[%s0 + $0x4] sm:$0xf]
  %v26 = vld [vmem:[%s0 + $0x8] sm:$0xf]
  %v27 = vld [vmem:[%s0 + $0xc] sm:$0xf]
  %v28 = vld [vmem:[%s0 + $0x10] sm:$0xf]
  %v29 = vld [vmem:[%s0 + $0x14] sm:$0xf]
  %v30 = vld [vmem:[%s0 + $0x18] sm:$0xf]
  %v31 = vld [vmem:[%s0 + $0x1c] sm:$0xf]
  %v32 = vld [vmem:[%s0 + $0x20] sm:$0xf]
  %v33 = vld [vmem:[%s0 + $0x24] sm:$0xf]
  %v34 = vld [vmem:[%s0 + $0x28] sm:$0xf]
  %v35 = vld [vmem:[%s0 + $0x2c] sm:$0xf]
  %v36 = vld [vmem:[%s0 + $0x30] sm:$0xf]
  %v37 = vld [vmem:[%s0 + $0x34] sm:$0xf]
  %v38 = vld [vmem:[%s0 + $0x38] sm:$0xf]
  %v39 = vld [vmem:[%s0 + $0x3c] sm:$0xf]
  %v40 = vld [vmem:[%s1] sm:$0xf]
  %v41 = vld [vmem:[%s1 + $0x4] sm:$0xf]
  %v42 = vld [vmem:[%s1 + $0x8] sm:$0xf]
  %v43 = vld [vmem:[%s1 + $0xc] sm:$0xf]
  %v44 = vld [vmem:[%s2] sm:$0x1]
  %v46 = vlaneseq
  %v47 = vshrl.u32 %v46, 7
  %v48 = vsub.s32 0, %v47
  %v49 = vrot.slane %v44, %v48
  %v67 = vunpack.c.l.b16 %v24
  %v68 = vunpack.c.l.b16 %v25
  %v69 = vunpack.c.l.b16 %v26
  %v70 = vunpack.c.l.b16 %v27
  %v71 = vunpack.c.l.b16 %v28
  %v72 = vunpack.c.l.b16 %v29
  %v73 = vunpack.c.l.b16 %v30
  %v74 = vunpack.c.l.b16 %v31
  %v75 = vunpack.c.l.b16 %v32
  %v76 = vunpack.c.l.b16 %v33
  %v77 = vunpack.c.l.b16 %v34
  %v78 = vunpack.c.l.b16 %v35
  %v79 = vunpack.c.l.b16 %v36
  %v80 = vunpack.c.l.b16 %v37
  %v81 = vunpack.c.l.b16 %v38
  %v82 = vunpack.c.l.b16 %v39
  %v83 = vpack.c.b16 %v68, %v67
  %v84 = vpack.c.b16 %v70, %v69
  %v85 = vpack.c.b16 %v72, %v71
  %v86 = vpack.c.b16 %v74, %v73
  %v87 = vpack.c.b16 %v76, %v75
  %v88 = vpack.c.b16 %v78, %v77
  %v89 = vpack.c.b16 %v80, %v79
  %v90 = vpack.c.b16 %v82, %v81
  %v95 = vunpack.c.l.b16 %v40
  %v96 = vunpack.c.l.b16 %v41
  %v97 = vunpack.c.l.b16 %v42
  %v98 = vunpack.c.l.b16 %v43
  %v99 = vpack.c.b16 %v96, %v95
  %v100 = vpack.c.b16 %v98, %v97
  %vm103 = vcmask 261120
  %v105 = vsel %vm103, %v83, 0
  %v108 = vsel %vm103, %v84, 0
  %v111 = vsel %vm103, %v85, 0
  %v114 = vsel %vm103, %v86, 0
  %v117 = vsel %vm103, %v87, 0
  %v120 = vsel %vm103, %v88, 0
  %v123 = vsel %vm103, %v89, 0
  %v126 = vsel %vm103, %v90, 0
  %128 = vmatprep.subr.bf16.mxu0 0
  %129 = vmatpush1.bf16.msra.mxu0 %v99
  %130 = vmatprep.subr.bf16.mxu0 0
  %131 = vmatpush1.bf16.msra.mxu0 %v100
  %132 = vmatprep.subr.bf16.mxu0 0
  %133 = vmatpush1.bf16.msra.mxu0 0
  %134 = vmatprep.subr.bf16.mxu0 0
  %135 = vmatpush1.bf16.msra.mxu0 0
  %136 = vmatprep.subr.bf16.mxu0 0
  %137 = vmatpush1.bf16.msra.mxu0 0
  %138 = vmatprep.subr.bf16.mxu0 0
  %139 = vmatpush1.bf16.msra.mxu0 0
  %140 = vmatprep.subr.bf16.mxu0 0
  %141 = vmatpush1.bf16.msra.mxu0 0
  %142 = vmatprep.subr.bf16.mxu0 0
  %143 = vmatpush1.bf16.msra.mxu0 0
  %144 = vmatprep.subr.bf16.mxu0 0
  %145 = vmatpush1.bf16.msra.mxu0 0
  %146 = vmatprep.subr.bf16.mxu0 0
  %147 = vmatpush1.bf16.msra.mxu0 0
  %148 = vmatprep.subr.bf16.mxu0 0
  %149 = vmatpush1.bf16.msra.mxu0 0
  %150 = vmatprep.subr.bf16.mxu0 0
  %151 = vmatpush1.bf16.msra.mxu0 0
  %152 = vmatprep.subr.bf16.mxu0 0
  %153 = vmatpush1.bf16.msra.mxu0 0
  %154 = vmatprep.subr.bf16.mxu0 0
  %155 = vmatpush1.bf16.msra.mxu0 0
  %156 = vmatprep.subr.bf16.mxu0 0
  %157 = vmatpush1.bf16.msra.mxu0 0
  %158 = vmatprep.subr.bf16.mxu0 0
  %159 = vmatpush1.bf16.msra.mxu0 0
  %160 = vmatprep.mubr.bf16.mxu0 0
  %161 = vmatmul.mubr.bf16.gmra.mrb[0].mxu0 %v105
  %v162 = vpop.f32.mrb[0].mxu0
  %v163 = vadd.f32 %v49, %v162
  %v164 = vpop.f32.mrb[0].mxu0
  %v165 = vpop.f32.mrb[0].mxu0
  %v166 = vadd.f32 %v49, %v165
  %v167 = vpop.f32.mrb[0].mxu0
  %168 = vmatprep.mubr.bf16.mxu0 0
  %169 = vmatmul.mubr.bf16.gmra.mrb[0].mxu0 %v108
  %v170 = vpop.f32.mrb[0].mxu0
  %v171 = vadd.f32 %v49, %v170
  %v172 = vpop.f32.mrb[0].mxu0
  %v173 = vpop.f32.mrb[0].mxu0
  %v174 = vadd.f32 %v49, %v173
  %v175 = vpop.f32.mrb[0].mxu0
  %176 = vmatprep.mubr.bf16.mxu0 0
  %177 = vmatmul.mubr.bf16.gmra.mrb[0].mxu0 %v111
  %v178 = vpop.f32.mrb[0].mxu0
  %v179 = vadd.f32 %v49, %v178
  %v180 = vpop.f32.mrb[0].mxu0
  %v181 = vpop.f32.mrb[0].mxu0
  %v182 = vadd.f32 %v49, %v181
  %v183 = vpop.f32.mrb[0].mxu0
  %184 = vmatprep.mubr.bf16.mxu0 0
  %185 = vmatmul.mubr.bf16.gmra.mrb[0].mxu0 %v114
  %v186 = vpop.f32.mrb[0].mxu0
  %v187 = vadd.f32 %v49, %v186
  %v188 = vpop.f32.mrb[0].mxu0
  %v189 = vpop.f32.mrb[0].mxu0
  %v190 = vadd.f32 %v49, %v189
  %v191 = vpop.f32.mrb[0].mxu0
  %192 = vmatprep.mubr.bf16.mxu0 0
  %193 = vmatmul.mubr.bf16.gmra.mrb[0].mxu0 %v117
  %v194 = vpop.f32.mrb[0].mxu0
  %v195 = vadd.f32 %v49, %v194
  %v196 = vpop.f32.mrb[0].mxu0
  %v197 = vpop.f32.mrb[0].mxu0
  %v198 = vadd.f32 %v49, %v197
  %v199 = vpop.f32.mrb[0].mxu0
  %200 = vmatprep.mubr.bf16.mxu0 0
  %201 = vmatmul.mubr.bf16.gmra.mrb[0].mxu0 %v120
  %v202 = vpop.f32.mrb[0].mxu0
  %v203 = vadd.f32 %v49, %v202
  %v204 = vpop.f32.mrb[0].mxu0
  %v205 = vpop.f32.mrb[0].mxu0
  %v206 = vadd.f32 %v49, %v205
  %v207 = vpop.f32.mrb[0].mxu0
  %208 = vmatprep.mubr.bf16.mxu0 0
  %209 = vmatmul.mubr.bf16.gmra.mrb[0].mxu0 %v123
  %v210 = vpop.f32.mrb[0].mxu0
  %v211 = vadd.f32 %v49, %v210
  %v212 = vpop.f32.mrb[0].mxu0
  %v213 = vpop.f32.mrb[0].mxu0
  %v214 = vadd.f32 %v49, %v213
  %v215 = vpop.f32.mrb[0].mxu0
  %216 = vmatprep.mubr.bf16.mxu0 0
  %217 = vmatmul.mubr.bf16.gmra.mrb[0].mxu0 %v126
  %v218 = vpop.f32.mrb[0].mxu0
  %v219 = vadd.f32 %v49, %v218
  %v220 = vpop.f32.mrb[0].mxu0
  %v221 = vpop.f32.mrb[0].mxu0
  %v222 = vadd.f32 %v49, %v221
  %v223 = vpop.f32.mrb[0].mxu0
  %224 = vdwg.mxu0
  %v225 = vld [vmem:[%s3] sm:$0xf]
  %v226 = vld [vmem:[%s3 + $0x4] sm:$0xf]
  %v227 = vld [vmem:[%s3 + $0x8] sm:$0xf]
  %v228 = vld [vmem:[%s3 + $0xc] sm:$0xf]
  %v229 = vld [vmem:[%s3 + $0x10] sm:$0xf]
  %v230 = vld [vmem:[%s3 + $0x14] sm:$0xf]
  %v231 = vld [vmem:[%s3 + $0x18] sm:$0xf]
  %v232 = vld [vmem:[%s3 + $0x1c] sm:$0xf]
  %v233 = vunpack.c.l.bf16 %v225
  %v234 = vunpack.c.l.bf16 %v226
  %v235 = vunpack.c.l.bf16 %v227
  %v236 = vunpack.c.l.bf16 %v228
  %v237 = vunpack.c.l.bf16 %v229
  %v238 = vunpack.c.l.bf16 %v230
  %v239 = vunpack.c.l.bf16 %v231
  %v240 = vunpack.c.l.bf16 %v232
  %v241 = vadd.f32 %v163, %v233
  %v242 = vadd.f32 %v166, %v233
  %v243 = vadd.f32 %v171, %v234
  %v244 = vadd.f32 %v174, %v234
  %v245 = vadd.f32 %v179, %v235
  %v246 = vadd.f32 %v182, %v235
  %v247 = vadd.f32 %v187, %v236
  %v248 = vadd.f32 %v190, %v236
  %v249 = vadd.f32 %v195, %v237
  %v250 = vadd.f32 %v198, %v237
  %v251 = vadd.f32 %v203, %v238
  %v252 = vadd.f32 %v206, %v238
  %v253 = vadd.f32 %v211, %v239
  %v254 = vadd.f32 %v214, %v239
  %v255 = vadd.f32 %v219, %v240
  %v256 = vadd.f32 %v222, %v240
  %v257 = vpack.c.bf16 %v242, %v241
  %v258 = vpack.c.bf16 %v244, %v243
  %v259 = vpack.c.bf16 %v246, %v245
  %v260 = vpack.c.bf16 %v248, %v247
  %v261 = vpack.c.bf16 %v250, %v249
  %v262 = vpack.c.bf16 %v252, %v251
  %v263 = vpack.c.bf16 %v254, %v253
  %v264 = vpack.c.bf16 %v256, %v255
  %v265 = vld [vmem:[%s4] sm:$0xf]
  %v266 = vld [vmem:[%s4 + $0x4] sm:$0xf]
  %v267 = vld [vmem:[%s4 + $0x8] sm:$0xf]
  %v268 = vld [vmem:[%s4 + $0xc] sm:$0xf]
  %v269 = vld [vmem:[%s5] sm:$0x1]
  %v271 = vlaneseq
  %v272 = vshrl.u32 %v271, 7
  %v273 = vsub.s32 0, %v272
  %v274 = vrot.slane %v269, %v273
  %v280 = vunpack.c.l.b16 %v265
  %v281 = vunpack.c.l.b16 %v266
  %v282 = vunpack.c.l.b16 %v267
  %v283 = vunpack.c.l.b16 %v268
  %v284 = vpack.c.b16 %v281, %v280
  %v285 = vpack.c.b16 %v283, %v282
  %v289 = vsel %vm103, %v257, 0
  %v292 = vsel %vm103, %v258, 0
  %v295 = vsel %vm103, %v259, 0
  %v298 = vsel %vm103, %v260, 0
  %v301 = vsel %vm103, %v261, 0
  %v304 = vsel %vm103, %v262, 0
  %v307 = vsel %vm103, %v263, 0
  %v310 = vsel %vm103, %v264, 0
  %312 = vmatprep.subr.bf16.mxu0 0
  %313 = vmatpush1.bf16.msra.mxu0 %v284
  %314 = vmatprep.subr.bf16.mxu0 0
  %315 = vmatpush1.bf16.msra.mxu0 %v285
  %316 = vmatprep.subr.bf16.mxu0 0
  %317 = vmatpush1.bf16.msra.mxu0 0
  %318 = vmatprep.subr.bf16.mxu0 0
  %319 = vmatpush1.bf16.msra.mxu0 0
  %320 = vmatprep.subr.bf16.mxu0 0
  %321 = vmatpush1.bf16.msra.mxu0 0
  %322 = vmatprep.subr.bf16.mxu0 0
  %323 = vmatpush1.bf16.msra.mxu0 0
  %324 = vmatprep.subr.bf16.mxu0 0
  %325 = vmatpush1.bf16.msra.mxu0 0
  %326 = vmatprep.subr.bf16.mxu0 0
  %327 = vmatpush1.bf16.msra.mxu0 0
  %328 = vmatprep.subr.bf16.mxu0 0
  %329 = vmatpush1.bf16.msra.mxu0 0
  %330 = vmatprep.subr.bf16.mxu0 0
  %331 = vmatpush1.bf16.msra.mxu0 0
  %332 = vmatprep.subr.bf16.mxu0 0
  %333 = vmatpush1.bf16.msra.mxu0 0
  %334 = vmatprep.subr.bf16.mxu0 0
  %335 = vmatpush1.bf16.msra.mxu0 0
  %336 = vmatprep.subr.bf16.mxu0 0
  %337 = vmatpush1.bf16.msra.mxu0 0
  %338 = vmatprep.subr.bf16.mxu0 0
  %339 = vmatpush1.bf16.msra.mxu0 0
  %340 = vmatprep.subr.bf16.mxu0 0
  %341 = vmatpush1.bf16.msra.mxu0 0
  %342 = vmatprep.subr.bf16.mxu0 0
  %343 = vmatpush1.bf16.msra.mxu0 0
  %344 = vmatprep.mubr.bf16.mxu0 0
  %345 = vmatmul.mubr.bf16.gmra.mrb[0].mxu0 %v289
  %v346 = vpop.f32.mrb[0].mxu0
  %v347 = vadd.f32 %v274, %v346
  %v348 = vpop.f32.mrb[0].mxu0
  %v349 = vpop.f32.mrb[0].mxu0
  %v350 = vadd.f32 %v274, %v349
  %v351 = vpop.f32.mrb[0].mxu0
  %352 = vmatprep.mubr.bf16.mxu0 0
  %353 = vmatmul.mubr.bf16.gmra.mrb[0].mxu0 %v292
  %v354 = vpop.f32.mrb[0].mxu0
  %v355 = vadd.f32 %v274, %v354
  %v356 = vpop.f32.mrb[0].mxu0
  %v357 = vpop.f32.mrb[0].mxu0
  %v358 = vadd.f32 %v274, %v357
  %v359 = vpop.f32.mrb[0].mxu0
  %360 = vmatprep.mubr.bf16.mxu0 0
  %361 = vmatmul.mubr.bf16.gmra.mrb[0].mxu0 %v295
  %v362 = vpop.f32.mrb[0].mxu0
  %v363 = vadd.f32 %v274, %v362
  %v364 = vpop.f32.mrb[0].mxu0
  %v365 = vpop.f32.mrb[0].mxu0
  %v366 = vadd.f32 %v274, %v365
  %v367 = vpop.f32.mrb[0].mxu0
  %368 = vmatprep.mubr.bf16.mxu0 0
  %369 = vmatmul.mubr.bf16.gmra.mrb[0].mxu0 %v298
  %v370 = vpop.f32.mrb[0].mxu0
  %v371 = vadd.f32 %v274, %v370
  %v372 = vpop.f32.mrb[0].mxu0
  %v373 = vpop.f32.mrb[0].mxu0
  %v374 = vadd.f32 %v274, %v373
  %v375 = vpop.f32.mrb[0].mxu0
  %376 = vmatprep.mubr.bf16.mxu0 0
  %377 = vmatmul.mubr.bf16.gmra.mrb[0].mxu0 %v301
  %v378 = vpop.f32.mrb[0].mxu0
  %v379 = vadd.f32 %v274, %v378
  %v380 = vpop.f32.mrb[0].mxu0
  %v381 = vpop.f32.mrb[0].mxu0
  %v382 = vadd.f32 %v274, %v381
  %v383 = vpop.f32.mrb[0].mxu0
  %384 = vmatprep.mubr.bf16.mxu0 0
  %385 = vmatmul.mubr.bf16.gmra.mrb[0].mxu0 %v304
  %v386 = vpop.f32.mrb[0].mxu0
  %v387 = vadd.f32 %v274, %v386
  %v388 = vpop.f32.mrb[0].mxu0
  %v389 = vpop.f32.mrb[0].mxu0
  %v390 = vadd.f32 %v274, %v389
  %v391 = vpop.f32.mrb[0].mxu0
  %392 = vmatprep.mubr.bf16.mxu0 0
  %393 = vmatmul.mubr.bf16.gmra.mrb[0].mxu0 %v307
  %v394 = vpop.f32.mrb[0].mxu0
  %v395 = vadd.f32 %v274, %v394
  %v396 = vpop.f32.mrb[0].mxu0
  %v397 = vpop.f32.mrb[0].mxu0
  %v398 = vadd.f32 %v274, %v397
  %v399 = vpop.f32.mrb[0].mxu0
  %400 = vmatprep.mubr.bf16.mxu0 0
  %401 = vmatmul.mubr.bf16.gmra.mrb[0].mxu0 %v310
  %v402 = vpop.f32.mrb[0].mxu0
  %v403 = vadd.f32 %v274, %v402
  %v404 = vpop.f32.mrb[0].mxu0
  %v405 = vpop.f32.mrb[0].mxu0
  %v406 = vadd.f32 %v274, %v405
  %v407 = vpop.f32.mrb[0].mxu0
  %408 = vdwg.mxu0
  %v409 = vpack.c.bf16 %v350, %v347
  %v410 = vpack.c.bf16 %v358, %v355
  %v411 = vpack.c.bf16 %v366, %v363
  %v412 = vpack.c.bf16 %v374, %v371
  %v413 = vpack.c.bf16 %v382, %v379
  %v414 = vpack.c.bf16 %v390, %v387
  %v415 = vpack.c.bf16 %v398, %v395
  %v416 = vpack.c.bf16 %v406, %v403
  %v425 = vunpack.c.l.b16 %v409
  %v426 = vunpack.c.h.b16 %v409
  %v427 = vunpack.c.l.b16 %v410
  %v428 = vunpack.c.h.b16 %v410
  %v429 = vunpack.c.l.b16 %v411
  %v430 = vunpack.c.h.b16 %v411
  %v431 = vunpack.c.l.b16 %v412
  %v432 = vunpack.c.h.b16 %v412
  %v433 = vunpack.c.l.b16 %v413
  %v434 = vunpack.c.h.b16 %v413
  %v435 = vunpack.c.l.b16 %v414
  %v436 = vunpack.c.h.b16 %v414
  %v437 = vunpack.c.l.b16 %v415
  %v438 = vunpack.c.h.b16 %v415
  %v439 = vunpack.c.l.b16 %v416
  %v440 = vunpack.c.h.b16 %v416
  %v441 = vpack.c.b16 %v425, %v425
  %v442 = vpack.c.b16 %v426, %v426
  %v443 = vpack.c.b16 %v427, %v427
  %v444 = vpack.c.b16 %v428, %v428
  %v445 = vpack.c.b16 %v429, %v429
  %v446 = vpack.c.b16 %v430, %v430
  %v447 = vpack.c.b16 %v431, %v431
  %v448 = vpack.c.b16 %v432, %v432
  %v449 = vpack.c.b16 %v433, %v433
  %v450 = vpack.c.b16 %v434, %v434
  %v451 = vpack.c.b16 %v435, %v435
  %v452 = vpack.c.b16 %v436, %v436
  %v453 = vpack.c.b16 %v437, %v437
  %v454 = vpack.c.b16 %v438, %v438
  %v455 = vpack.c.b16 %v439, %v439
  %v456 = vpack.c.b16 %v440, %v440
  %vm473 = vcmask 27648
  %474 = vst.msk [vmem:[%s6] sm:$0xf] %vm473, %v441
  %475 = vst.msk [vmem:[%s6 + $0x4] sm:$0xf] %vm473, %v442
  %476 = vst.msk [vmem:[%s6 + $0x8] sm:$0xf] %vm473, %v443
  %477 = vst.msk [vmem:[%s6 + $0xc] sm:$0xf] %vm473, %v444
  %478 = vst.msk [vmem:[%s6 + $0x10] sm:$0xf] %vm473, %v445
  %479 = vst.msk [vmem:[%s6 + $0x14] sm:$0xf] %vm473, %v446
  %480 = vst.msk [vmem:[%s6 + $0x18] sm:$0xf] %vm473, %v447
  %481 = vst.msk [vmem:[%s6 + $0x1c] sm:$0xf] %vm473, %v448
  %482 = vst.msk [vmem:[%s6 + $0x20] sm:$0xf] %vm473, %v449
  %483 = vst.msk [vmem:[%s6 + $0x24] sm:$0xf] %vm473, %v450
  %484 = vst.msk [vmem:[%s6 + $0x28] sm:$0xf] %vm473, %v451
  %485 = vst.msk [vmem:[%s6 + $0x2c] sm:$0xf] %vm473, %v452
  %486 = vst.msk [vmem:[%s6 + $0x30] sm:$0xf] %vm473, %v453
  %487 = vst.msk [vmem:[%s6 + $0x34] sm:$0xf] %vm473, %v454
  %488 = vst.msk [vmem:[%s6 + $0x38] sm:$0xf] %vm473, %v455
  %489 = vst.msk [vmem:[%s6 + $0x3c] sm:$0xf] %vm473, %v456
  // Predicated region
  $region26: #{sam_video_frame_encoder_forward.11} parent=0 // pred_check
    _
  $region27: #{sam_video_frame_encoder_forward.11} parent=0 // pred_check_branch
    %491 = sbr.rel (0) target = $region29
  $region28: #{sam_video_frame_encoder_forward.11} parent=0 // pred_region
    _
  $region29: #{sam_video_frame_encoder_forward.11} parent=0 // pred_fallthru
    _
  // Predicated region
  $region30: #{sam_video_frame_encoder_forward.11} parent=0 // pred_check
    _
  $region31: #{sam_video_frame_encoder_forward.11} parent=0 // pred_check_branch
    %493 = sbr.rel (0) target = $region33
  $region32: #{sam_video_frame_encoder_forward.11} parent=0 // pred_region
    _
  $region33: #{sam_video_frame_encoder_forward.11} parent=0 // pred_fallthru
    _

</llo_original>
